<compile_context>
chip_gen: v6e
topology: v6e:2x2x1
jax: 0.10.0
libtpu: 0.0.40
codegen_flags: <defaults>
</compile_context>

<pallas_src>
import functools

import jax
import jax.numpy as jnp
from jax.experimental import pallas as pl
from jax.experimental.pallas import tpu as pltpu


# -----------------------------------------------------------------------------
# helpers
# -----------------------------------------------------------------------------
def _layer_norm(x, gamma, beta, eps=1e-5):
    mu = jnp.mean(x, axis=-1, keepdims=True)
    var = jnp.mean((x - mu) ** 2, axis=-1, keepdims=True)
    return (x - mu) * jax.lax.rsqrt(var + eps) * gamma + beta


def _tpu_vmem_capacity_bytes():
    """Physical VMEM of the attached TPU (conservative 64 MiB fallback)."""
    try:
        return int(pltpu.get_tpu_info().vmem_capacity_bytes)
    except Exception:
        return 64 * 1024 * 1024


def _vmem_bytes_estimate(M, H, P, S, Bb):
    """Rough per-grid-step VMEM footprint (weights double-buffered + activations)."""
    bf, f = 2, 4
    # per-layer MXU weights (wqkv + wo + w1 + w2), bf16, 2-deep pipeline buffering
    weights = 2 * (3 * H * H + H * H + 2 * H * P) * bf
    # resident activations / temporaries per row of the (M, H) block
    per_row = (2 * H * f        # x0 input (double-buffered)
               + 2 * H * f      # residual/output block (generous: 2 buffers)
               + 3 * H * f      # fused qkv (f32)
               + 3 * H * bf     # bf16 copies feeding the MXU
               + H * f          # merged attention context
               + P * f + P * bf)  # FFN hidden (f32 + bf16 copy)
    # attention score temporaries (a few heads' energy/p in flight)
    attn = 4 * Bb * S * S * f
    return weights + M * per_row + attn + (1 << 20)


def _pick_block_batch(B, S, H, P, vmem_budget, target_m=512, max_m=2048):
    """Largest divisor of B whose flattened M=block_batch*S fits the VMEM budget,
    stopping once M reaches target_m (>=512 rows amortizes weight streaming)."""
    best = 1
    for bb in range(1, B + 1):
        if B % bb:
            continue
        M = bb * S
        if M % 8 and M != B * S:          # (8, 128) second-minor divisibility
            continue
        if bb > 1 and (M > max_m or _vmem_bytes_estimate(M, H, P, S, bb) > vmem_budget):
            break
        best = bb
        if M >= target_m:
            break
    # v7x megacore: prefer >= 2 batch blocks so the "parallel" axis can shard
    # across both TensorCores, as long as M stays MXU-friendly (>= 256 rows).
    # Neutral on v5e/v6e (single TC).
    if best == B and B % 2 == 0:
        half_m = (B // 2) * S
        if half_m >= 256 and half_m % 8 == 0:
            best = B // 2
    return best


# -----------------------------------------------------------------------------
# Fused encoder kernel: embedding finalize + all EncoderLayers.
# grid = (batch_blocks, n_layers); the residual stream lives in out_ref across
# the layer axis (its block index is constant in the layer dimension).
# -----------------------------------------------------------------------------
def _fused_encoder_kernel(x0_ref, mask_ref,
                          wqkv_ref, bqkv_ref, wo_ref, bo_ref,
                          g1_ref, be1_ref, w1_ref, bf1_ref,
                          w2_ref, bf2_ref, g2_ref, be2_ref,
                          out_ref, *, n_heads):
    layer = pl.program_id(1)

    Bb, _, S = mask_ref.shape          # batch elements in this block, seq length
    M, H = x0_ref.shape                # M = Bb * S flattened rows
    head_dim = H // n_heads
    inv_scale = jnp.float32(1.0 / float(head_dim) ** 0.5)

    # ---- layer 0: seed the VMEM-resident residual stream with the embedding ----
    @pl.when(layer == 0)
    def _():
        out_ref[...] = x0_ref[...]

    x = out_ref[...]                   # (M, H) f32 residual stream
    xb = x.astype(jnp.bfloat16)

    # ---- fused Q/K/V projection: one MXU pass over all M rows -------------------
    qkv = jnp.dot(xb, wqkv_ref[0], preferred_element_type=jnp.float32) + bqkv_ref[0]
    qkv3 = qkv.reshape(Bb, S, 3 * H)   # leading-dim split only (free)

    # additive padding-mask bias, computed ONCE.  (mask-1)*1e10 after the 1/sqrt(hd)
    # scale is equivalent to the reference's masked_fill(mask == 0, -1e10) for a
    # {0,1} mask (including the all-padded-row degenerate case).
    bias = jnp.broadcast_to((mask_ref[...] - 1.0) * jnp.float32(1e10), (Bb, S, S))

    # ---- multi-head attention: per-head lane slice, batch-leading 3-D einsums ---
    # (no per-(batch, head) stack/concat; O(n_heads) slices independent of Bb)
    ctx_heads = []
    for h in range(n_heads):
        q_h = qkv3[:, :, 0 * H + h * head_dim:0 * H + (h + 1) * head_dim]
        k_h = qkv3[:, :, 1 * H + h * head_dim:1 * H + (h + 1) * head_dim]
        v_h = qkv3[:, :, 2 * H + h * head_dim:2 * H + (h + 1) * head_dim]
        q_h = q_h.astype(jnp.bfloat16)
        k_h = k_h.astype(jnp.bfloat16)
        v_h = v_h.astype(jnp.bfloat16)

        energy = jnp.einsum('bqd,bkd->bqk', q_h, k_h,
                            preferred_element_type=jnp.float32) * inv_scale + bias
        m = jnp.max(energy, axis=-1, keepdims=True)
        p = jnp.exp(energy - m)
        # approx reciprocal -> EUP slot; part of the bf16-level test tolerance.
        attn = p * pl.reciprocal(jnp.sum(p, axis=-1, keepdims=True), approx=True)
        ctx_heads.append(jnp.einsum('bqk,bkd->bqd', attn.astype(jnp.bfloat16), v_h,
                                    preferred_element_type=jnp.float32))

    x_attn = jnp.concatenate(ctx_heads, axis=-1).reshape(M, H)   # merge heads

    attn_out = jnp.dot(x_attn.astype(jnp.bfloat16), wo_ref[0],
                       preferred_element_type=jnp.float32) + bo_ref[0]

    # ---- residual + LayerNorm 1 --------------------------------------------------
    y = _layer_norm(x + attn_out, g1_ref[0], be1_ref[0])

    # ---- position-wise FFN (relu) -------------------------------------------------
    h1 = jnp.dot(y.astype(jnp.bfloat16), w1_ref[0],
                 preferred_element_type=jnp.float32) + bf1_ref[0]
    h1 = jnp.maximum(h1, 0.0)
    h2 = jnp.dot(h1.astype(jnp.bfloat16), w2_ref[0],
                 preferred_element_type=jnp.float32) + bf2_ref[0]

    # ---- residual + LayerNorm 2: out_ref IS the residual stream -------------------
    # HBM writeback happens only when the batch-block index changes (once per block).
    out_ref[...] = _layer_norm(y + h2, g2_ref[0], be2_ref[0])


# -----------------------------------------------------------------------------
# Encoder forward: embedding (XLA) + one fused Pallas call over all layers
# -----------------------------------------------------------------------------
def encoder_forward(src_ids, src_mask, params, n_heads, *, block_batch=None):
    B, S = src_ids.shape
    tok_table = params["tok_emb"]                 # (V, H) f32
    _, H = tok_table.shape
    assert H % n_heads == 0
    layers = params["layers"]
    L = len(layers)
    P = layers[0]["w1"].shape[1]

    # Embedding: gather + scale + positional add fused into a single x0 input
    # (no separate pos stream, no (B*S, H) tile materialization beyond x0 itself).
    tok = jnp.take(tok_table, src_ids, axis=0)                       # (B, S, H)
    x0 = (tok * jnp.float32(float(H) ** 0.5)
          + params["pos_emb"][:S][None]).reshape(B * S, H)           # (B*S, H) f32

    # Stack per-layer weights on a leading layer axis (streamed / double-buffered
    # by the BlockSpec pipeline along the "arbitrary" layer grid axis).
    bf16 = jnp.bfloat16
    wqkv = jnp.stack([jnp.concatenate([lp["wq"], lp["wk"], lp["wv"]], axis=1)
                      for lp in layers]).astype(bf16)                # (L, H, 3H)
    bqkv = jnp.stack([jnp.concatenate([lp["bq"], lp["bk"], lp["bv"]], axis=1)
                      for lp in layers])                             # (L, 1, 3H)
    wo = jnp.stack([lp["wo"] for lp in layers]).astype(bf16)         # (L, H, H)
    bo = jnp.stack([lp["bo"] for lp in layers])                      # (L, 1, H)
    g1 = jnp.stack([lp["ln1_g"] for lp in layers])
    be1 = jnp.stack([lp["ln1_b"] for lp in layers])
    w1 = jnp.stack([lp["w1"] for lp in layers]).astype(bf16)         # (L, H, P)
    b1 = jnp.stack([lp["b1"] for lp in layers])
    w2 = jnp.stack([lp["w2"] for lp in layers]).astype(bf16)         # (L, P, H)
    b2 = jnp.stack([lp["b2"] for lp in layers])
    g2 = jnp.stack([lp["ln2_g"] for lp in layers])
    be2 = jnp.stack([lp["ln2_b"] for lp in layers])

    # Generation-aware VMEM budget (~7/8 of physical, capped at 100 MiB; v7x has
    # 64 MiB physical -> ~56 MiB) and a block_batch that maximizes weight reuse.
    vmem_cap = _tpu_vmem_capacity_bytes()
    vmem_limit = min((vmem_cap * 7) // 8, 100 * 1024 * 1024)
    if block_batch is None:
        block_batch = _pick_block_batch(B, S, H, P, int(vmem_limit * 0.85))
    while B % block_batch:
        block_batch -= 1
    nb = B // block_batch
    M = block_batch * S

    kernel = functools.partial(_fused_encoder_kernel, n_heads=n_heads)

    def act_spec():
        return pl.BlockSpec((M, H), lambda i, l: (i, 0))

    def lw_spec(*dims):
        return pl.BlockSpec((1,) + dims, lambda i, l: (l, 0, 0))

    out = pl.pallas_call(
        kernel,
        out_shape=jax.ShapeDtypeStruct((B * S, H), jnp.float32),
        grid=(nb, L),
        in_specs=[
            act_spec(),                                              # x0 = tok*sqrt(H)+pos
            pl.BlockSpec((block_batch, 1, S), lambda i, l: (i, 0, 0)),  # padding mask
            lw_spec(H, 3 * H), lw_spec(1, 3 * H),                    # fused wqkv, bqkv
            lw_spec(H, H), lw_spec(1, H),                            # wo, bo
            lw_spec(1, H), lw_spec(1, H),                            # ln1 gamma / beta
            lw_spec(H, P), lw_spec(1, P),                            # ffn w1, b1
            lw_spec(P, H), lw_spec(1, H),                            # ffn w2, b2
            lw_spec(1, H), lw_spec(1, H),                            # ln2 gamma / beta
        ],
        out_specs=act_spec(),                                        # residual stream
        compiler_params=pltpu.CompilerParams(
            dimension_semantics=("parallel", "arbitrary"),
            vmem_limit_bytes=int(vmem_limit)),
    )(x0, src_mask, wqkv, bqkv, wo, bo,
      g1, be1, w1, b1, w2, b2, g2, be2)
    return out.reshape(B, S, H)


# -----------------------------------------------------------------------------
# Pure-JAX f32 reference (mirrors the PyTorch module) for a sanity check
# -----------------------------------------------------------------------------
def reference_forward(src, src_mask, params, n_heads):
    B, S = src.shape
    H = params["tok_emb"].shape[1]
    hd = H // n_heads
    x = (jnp.take(params["tok_emb"], src, axis=0) * jnp.sqrt(jnp.float32(H))
         + params["pos_emb"][:S][None])
    mask4 = src_mask[:, None, :, :]                                  # (B,1,1,S)
    for lp in params["layers"]:
        q = x @ lp["wq"] + lp["bq"]
        k = x @ lp["wk"] + lp["bk"]
        v = x @ lp["wv"] + lp["bv"]

        def split(t):
            return t.reshape(B, S, n_heads, hd).transpose(0, 2, 1, 3)

        qh, kh, vh = split(q), split(k), split(v)
        e = jnp.einsum('bhqd,bhkd->bhqk', qh, kh) / jnp.sqrt(jnp.float32(hd))
        e = jnp.where(mask4 == 0.0, -1e10, e)
        a = jax.nn.softmax(e, axis=-1)
        c = jnp.einsum('bhqk,bhkd->bhqd', a, vh).transpose(0, 2, 1, 3).reshape(B, S, H)
        attn_out = c @ lp["wo"] + lp["bo"]
        x = _layer_norm(x + attn_out, lp["ln1_g"], lp["ln1_b"])
        h1 = jax.nn.relu(x @ lp["w1"] + lp["b1"])
        h2 = h1 @ lp["w2"] + lp["b2"]
        x = _layer_norm(x + h2, lp["ln2_g"], lp["ln2_b"])
    return x


# -----------------------------------------------------------------------------
# Deterministic parameter construction
# -----------------------------------------------------------------------------
def init_params(key, input_dim, hid_dim, n_layers, pf_dim, max_length):
    keys = jax.random.split(key, 2 + n_layers)

    def dense(k, fan_in, fan_out):
        kw, kb = jax.random.split(k)
        w = jax.random.normal(kw, (fan_in, fan_out), jnp.float32) * 0.05
        b = jax.random.normal(kb, (1, fan_out), jnp.float32) * 0.05
        return w, b

    params = {
        "tok_emb": jax.random.normal(keys[0], (input_dim, hid_dim), jnp.float32) * 0.1,
        "pos_emb": jax.random.normal(keys[1], (max_length, hid_dim), jnp.float32) * 0.1,
        "layers": [],
    }
    for li in range(n_layers):
        lk = jax.random.split(keys[2 + li], 6)
        wq, bq = dense(lk[0], hid_dim, hid_dim)
        wk, bk = dense(lk[1], hid_dim, hid_dim)
        wv, bv = dense(lk[2], hid_dim, hid_dim)
        wo, bo = dense(lk[3], hid_dim, hid_dim)
        w1, b1 = dense(lk[4], hid_dim, pf_dim)
        w2, b2 = dense(lk[5], pf_dim, hid_dim)
        params["layers"].append({
            "wq": wq, "bq": bq, "wk": wk, "bk": bk,
            "wv": wv, "bv": bv, "wo": wo, "bo": bo,
            "ln1_g": jnp.ones((1, hid_dim), jnp.float32),
            "ln1_b": jnp.zeros((1, hid_dim), jnp.float32),
            "w1": w1, "b1": b1, "w2": w2, "b2": b2,
            "ln2_g": jnp.ones((1, hid_dim), jnp.float32),
            "ln2_b": jnp.zeros((1, hid_dim), jnp.float32),
        })
    return params


if __name__ == "__main__":
    # Small shapes consistent with the module's forward (toy; real configs should
    # use hid/head_dim that are multiples of 128 and seq a multiple of 8).
    B, S = 2, 8
    INPUT_DIM, HID_DIM, N_LAYERS, N_HEADS, PF_DIM, MAX_LEN = 50, 32, 2, 4, 64, 100

    key = jax.random.PRNGKey(0)
    kp, ks = jax.random.split(key)
    params = init_params(kp, INPUT_DIM, HID_DIM, N_LAYERS, PF_DIM, MAX_LEN)

    # Token ids with id 0 = <pad>; last two positions of batch 1 are padding.
    src = jax.random.randint(ks, (B, S), minval=1, maxval=INPUT_DIM, dtype=jnp.int32)
    src = src.at[1, -2:].set(0)
    src_mask = (src != 0).astype(jnp.float32).reshape(B, 1, S)   # (B,1,S) ~ (B,1,1,S)

    out = encoder_forward(src, src_mask, params, N_HEADS)
    out = jax.block_until_ready(out)

    ref = reference_forward(src, src_mask, params, N_HEADS)
    max_err = float(jnp.max(jnp.abs(out - ref)))

    assert out.shape == (B, S, HID_DIM)
    assert bool(jnp.all(jnp.isfinite(out)))
    # bf16 MXU inputs + approx-reciprocal softmax denominator -> relaxed tolerance;
    # use approx=False / f32 weights if tighter parity is ever required.
    assert max_err < 0.2, f"max abs err vs f32 reference = {max_err}"
    print("KERNEL_OK")
</pallas_src>

<mosaic_0001>
module attributes {stable_mosaic.version = 11 : i64} {
  func.func @_fused_encoder_kernel(%arg0: i32, %arg1: i32, %arg2: memref<16x32xf32, #tpu.memory_space<vmem>>, %arg3: memref<2x1x8xf32, #tpu.memory_space<vmem>>, %arg4: memref<1x32x96xbf16, #tpu.memory_space<vmem>>, %arg5: memref<1x1x96xf32, #tpu.memory_space<vmem>>, %arg6: memref<1x32x32xbf16, #tpu.memory_space<vmem>>, %arg7: memref<1x1x32xf32, #tpu.memory_space<vmem>>, %arg8: memref<1x1x32xf32, #tpu.memory_space<vmem>>, %arg9: memref<1x1x32xf32, #tpu.memory_space<vmem>>, %arg10: memref<1x32x64xbf16, #tpu.memory_space<vmem>>, %arg11: memref<1x1x64xf32, #tpu.memory_space<vmem>>, %arg12: memref<1x64x32xbf16, #tpu.memory_space<vmem>>, %arg13: memref<1x1x32xf32, #tpu.memory_space<vmem>>, %arg14: memref<1x1x32xf32, #tpu.memory_space<vmem>>, %arg15: memref<1x1x32xf32, #tpu.memory_space<vmem>>, %arg16: memref<16x32xf32, #tpu.memory_space<vmem>>) attributes {dimension_semantics = [#tpu.dimension_semantics<parallel>, #tpu.dimension_semantics<arbitrary>], iteration_bounds = array<i64: 1, 2>, scalar_prefetch = 0 : i64, scratch_operands = 0 : i64, tpu.core_type = #tpu.core_type<tc>, window_params = [{transform_indices = @transform_0, window_bounds = array<i64: 16, 32>}, {transform_indices = @transform_1, window_bounds = array<i64: 2, 1, 8>}, {transform_indices = @transform_2, window_bounds = array<i64: 1, 32, 96>}, {transform_indices = @transform_3, window_bounds = array<i64: 1, 1, 96>}, {transform_indices = @transform_4, window_bounds = array<i64: 1, 32, 32>}, {transform_indices = @transform_5, window_bounds = array<i64: 1, 1, 32>}, {transform_indices = @transform_6, window_bounds = array<i64: 1, 1, 32>}, {transform_indices = @transform_7, window_bounds = array<i64: 1, 1, 32>}, {transform_indices = @transform_8, window_bounds = array<i64: 1, 32, 64>}, {transform_indices = @transform_9, window_bounds = array<i64: 1, 1, 64>}, {transform_indices = @transform_10, window_bounds = array<i64: 1, 64, 32>}, {transform_indices = @transform_11, window_bounds = array<i64: 1, 1, 32>}, {transform_indices = @transform_12, window_bounds = array<i64: 1, 1, 32>}, {transform_indices = @transform_13, window_bounds = array<i64: 1, 1, 32>}, {transform_indices = @transform_14, window_bounds = array<i64: 16, 32>}]} {
    %c0_i32 = arith.constant 0 : i32
    %0 = arith.cmpi eq, %arg1, %c0_i32 : i32
    %1 = arith.extui %0 : i1 to i32
    %c0_i32_0 = arith.constant 0 : i32
    %2 = arith.cmpi ne, %1, %c0_i32_0 : i32
    scf.if %2 {
      %c0_79 = arith.constant 0 : index
      %c0_80 = arith.constant 0 : index
      %191 = vector.load %arg2[%c0_79, %c0_80] : memref<16x32xf32, #tpu.memory_space<vmem>>, vector<16x32xf32>
      %c0_81 = arith.constant 0 : index
      %c0_82 = arith.constant 0 : index
      %192 = vector.load %arg16[%c0_81, %c0_82] : memref<16x32xf32, #tpu.memory_space<vmem>>, vector<16x32xf32>
      tpu.vector_store %arg16[%c0_81, %c0_82], %191 {strides = array<i32>} : memref<16x32xf32, #tpu.memory_space<vmem>>, vector<16x32xf32>,
    } else {
    }
    %c0 = arith.constant 0 : index
    %c0_1 = arith.constant 0 : index
    %3 = vector.load %arg16[%c0, %c0_1] : memref<16x32xf32, #tpu.memory_space<vmem>>, vector<16x32xf32>
    %4 = arith.truncf %3 : vector<16x32xf32> to vector<16x32xbf16>
    %c0_2 = arith.constant 0 : index
    %c0_3 = arith.constant 0 : index
    %c0_4 = arith.constant 0 : index
    %5 = vector.load %arg4[%c0_2, %c0_3, %c0_4] : memref<1x32x96xbf16, #tpu.memory_space<vmem>>, vector<1x32x96xbf16>
    %6 = vector.shape_cast %5 : vector<1x32x96xbf16> to vector<32x96xbf16>
    %cst = arith.constant dense<0.000000e+00> : vector<16x96xf32>
    %7 = tpu.matmul %4, %6, %cst {dimension_numbers = #tpu.dot_dimension_numbers<[1], [0], [0], [1], [0, 0, 1, 1], [], []>} : vector<16x32xbf16>, vector<32x96xbf16>, vector<16x96xf32> -> vector<16x96xf32>
    %c0_5 = arith.constant 0 : index
    %c0_6 = arith.constant 0 : index
    %c0_7 = arith.constant 0 : index
    %8 = vector.load %arg5[%c0_5, %c0_6, %c0_7] : memref<1x1x96xf32, #tpu.memory_space<vmem>>, vector<1x1x96xf32>
    %9 = vector.shape_cast %8 : vector<1x1x96xf32> to vector<1x96xf32>
    %10 = vector.broadcast %9 : vector<1x96xf32> to vector<16x96xf32>
    %11 = arith.addf %7, %10 : vector<16x96xf32>
    %12 = vector.shape_cast %11 : vector<16x96xf32> to vector<2x8x96xf32>
    %c0_8 = arith.constant 0 : index
    %c0_9 = arith.constant 0 : index
    %c0_10 = arith.constant 0 : index
    %13 = vector.load %arg3[%c0_8, %c0_9, %c0_10] : memref<2x1x8xf32, #tpu.memory_space<vmem>>, vector<2x1x8xf32>
    %cst_11 = arith.constant 1.000000e+00 : f32
    %14 = vector.broadcast %cst_11 : f32 to vector<2x1x8xf32>
    %15 = arith.subf %13, %14 : vector<2x1x8xf32>
    %cst_12 = arith.constant 1.000000e+10 : f32
    %16 = vector.broadcast %cst_12 : f32 to vector<2x1x8xf32>
    %17 = arith.mulf %15, %16 : vector<2x1x8xf32>
    %18 = vector.shape_cast %17 : vector<2x1x8xf32> to vector<2x1x8xf32>
    %19 = vector.broadcast %18 : vector<2x1x8xf32> to vector<2x8x8xf32>
    %20 = vector.extract_strided_slice %12 {offsets = [0, 0, 0], sizes = [2, 8, 8], strides = [1, 1, 1]} : vector<2x8x96xf32> to vector<2x8x8xf32>
    %21 = vector.extract_strided_slice %12 {offsets = [0, 0, 32], sizes = [2, 8, 8], strides = [1, 1, 1]} : vector<2x8x96xf32> to vector<2x8x8xf32>
    %22 = vector.extract_strided_slice %12 {offsets = [0, 0, 64], sizes = [2, 8, 8], strides = [1, 1, 1]} : vector<2x8x96xf32> to vector<2x8x8xf32>
    %23 = arith.truncf %20 : vector<2x8x8xf32> to vector<2x8x8xbf16>
    %24 = arith.truncf %21 : vector<2x8x8xf32> to vector<2x8x8xbf16>
    %25 = arith.truncf %22 : vector<2x8x8xf32> to vector<2x8x8xbf16>
    "tpu.trace_start"() <{level = 10 : i32, message = "bqd,bkd->bqk"}> : () -> ()
    %cst_13 = arith.constant dense<0.000000e+00> : vector<2x8x8xf32>
    %26 = tpu.matmul %23, %24, %cst_13 {dimension_numbers = #tpu.dot_dimension_numbers<[2], [2], [1], [1], [0, 0, 0, 1, 1, 1], [0], [0]>} : vector<2x8x8xbf16>, vector<2x8x8xbf16>, vector<2x8x8xf32> -> vector<2x8x8xf32>
    "tpu.trace_stop"() : () -> ()
    %cst_14 = arith.constant 0.353553385 : f32
    %27 = vector.broadcast %cst_14 : f32 to vector<2x8x8xf32>
    %28 = arith.mulf %26, %27 : vector<2x8x8xf32>
    %29 = arith.addf %28, %19 : vector<2x8x8xf32>
    %cst_15 = arith.constant dense<0xFF800000> : vector<2x8xf32>
    %30 = vector.multi_reduction <maximumf>, %29, %cst_15 [2] : vector<2x8x8xf32> to vector<2x8xf32>
    %31 = vector.shape_cast %30 : vector<2x8xf32> to vector<2x8x1xf32>
    %32 = vector.broadcast %31 : vector<2x8x1xf32> to vector<2x8x8xf32>
    %33 = arith.subf %29, %32 : vector<2x8x8xf32>
    %34 = math.exp %33 : vector<2x8x8xf32>
    %cst_16 = arith.constant dense<0.000000e+00> : vector<2x8xf32>
    %35 = vector.multi_reduction <add>, %34, %cst_16 [2] : vector<2x8x8xf32> to vector<2x8xf32>
    %36 = vector.shape_cast %35 : vector<2x8xf32> to vector<2x8x1xf32>
    %37 = tpu.reciprocal %36 {approx = true} : vector<2x8x1xf32> -> vector<2x8x1xf32>
    %38 = vector.broadcast %37 : vector<2x8x1xf32> to vector<2x8x8xf32>
    %39 = arith.mulf %34, %38 : vector<2x8x8xf32>
    %40 = arith.truncf %39 : vector<2x8x8xf32> to vector<2x8x8xbf16>
    "tpu.trace_start"() <{level = 10 : i32, message = "bqk,bkd->bqd"}> : () -> ()
    %cst_17 = arith.constant dense<0.000000e+00> : vector<2x8x8xf32>
    %41 = tpu.matmul %40, %25, %cst_17 {dimension_numbers = #tpu.dot_dimension_numbers<[2], [1], [1], [2], [0, 0, 0, 1, 1, 2], [0], [0]>} : vector<2x8x8xbf16>, vector<2x8x8xbf16>, vector<2x8x8xf32> -> vector<2x8x8xf32>
    "tpu.trace_stop"() : () -> ()
    %42 = vector.extract_strided_slice %12 {offsets = [0, 0, 8], sizes = [2, 8, 8], strides = [1, 1, 1]} : vector<2x8x96xf32> to vector<2x8x8xf32>
    %43 = vector.extract_strided_slice %12 {offsets = [0, 0, 40], sizes = [2, 8, 8], strides = [1, 1, 1]} : vector<2x8x96xf32> to vector<2x8x8xf32>
    %44 = vector.extract_strided_slice %12 {offsets = [0, 0, 72], sizes = [2, 8, 8], strides = [1, 1, 1]} : vector<2x8x96xf32> to vector<2x8x8xf32>
    %45 = arith.truncf %42 : vector<2x8x8xf32> to vector<2x8x8xbf16>
    %46 = arith.truncf %43 : vector<2x8x8xf32> to vector<2x8x8xbf16>
    %47 = arith.truncf %44 : vector<2x8x8xf32> to vector<2x8x8xbf16>
    "tpu.trace_start"() <{level = 10 : i32, message = "bqd,bkd->bqk"}> : () -> ()
    %cst_18 = arith.constant dense<0.000000e+00> : vector<2x8x8xf32>
    %48 = tpu.matmul %45, %46, %cst_18 {dimension_numbers = #tpu.dot_dimension_numbers<[2], [2], [1], [1], [0, 0, 0, 1, 1, 1], [0], [0]>} : vector<2x8x8xbf16>, vector<2x8x8xbf16>, vector<2x8x8xf32> -> vector<2x8x8xf32>
    "tpu.trace_stop"() : () -> ()
    %cst_19 = arith.constant 0.353553385 : f32
    %49 = vector.broadcast %cst_19 : f32 to vector<2x8x8xf32>
    %50 = arith.mulf %48, %49 : vector<2x8x8xf32>
    %51 = arith.addf %50, %19 : vector<2x8x8xf32>
    %cst_20 = arith.constant dense<0xFF800000> : vector<2x8xf32>
    %52 = vector.multi_reduction <maximumf>, %51, %cst_20 [2] : vector<2x8x8xf32> to vector<2x8xf32>
    %53 = vector.shape_cast %52 : vector<2x8xf32> to vector<2x8x1xf32>
    %54 = vector.broadcast %53 : vector<2x8x1xf32> to vector<2x8x8xf32>
    %55 = arith.subf %51, %54 : vector<2x8x8xf32>
    %56 = math.exp %55 : vector<2x8x8xf32>
    %cst_21 = arith.constant dense<0.000000e+00> : vector<2x8xf32>
    %57 = vector.multi_reduction <add>, %56, %cst_21 [2] : vector<2x8x8xf32> to vector<2x8xf32>
    %58 = vector.shape_cast %57 : vector<2x8xf32> to vector<2x8x1xf32>
    %59 = tpu.reciprocal %58 {approx = true} : vector<2x8x1xf32> -> vector<2x8x1xf32>
    %60 = vector.broadcast %59 : vector<2x8x1xf32> to vector<2x8x8xf32>
    %61 = arith.mulf %56, %60 : vector<2x8x8xf32>
    %62 = arith.truncf %61 : vector<2x8x8xf32> to vector<2x8x8xbf16>
    "tpu.trace_start"() <{level = 10 : i32, message = "bqk,bkd->bqd"}> : () -> ()
    %cst_22 = arith.constant dense<0.000000e+00> : vector<2x8x8xf32>
    %63 = tpu.matmul %62, %47, %cst_22 {dimension_numbers = #tpu.dot_dimension_numbers<[2], [1], [1], [2], [0, 0, 0, 1, 1, 2], [0], [0]>} : vector<2x8x8xbf16>, vector<2x8x8xbf16>, vector<2x8x8xf32> -> vector<2x8x8xf32>
    "tpu.trace_stop"() : () -> ()
    %64 = vector.extract_strided_slice %12 {offsets = [0, 0, 16], sizes = [2, 8, 8], strides = [1, 1, 1]} : vector<2x8x96xf32> to vector<2x8x8xf32>
    %65 = vector.extract_strided_slice %12 {offsets = [0, 0, 48], sizes = [2, 8, 8], strides = [1, 1, 1]} : vector<2x8x96xf32> to vector<2x8x8xf32>
    %66 = vector.extract_strided_slice %12 {offsets = [0, 0, 80], sizes = [2, 8, 8], strides = [1, 1, 1]} : vector<2x8x96xf32> to vector<2x8x8xf32>
    %67 = arith.truncf %64 : vector<2x8x8xf32> to vector<2x8x8xbf16>
    %68 = arith.truncf %65 : vector<2x8x8xf32> to vector<2x8x8xbf16>
    %69 = arith.truncf %66 : vector<2x8x8xf32> to vector<2x8x8xbf16>
    "tpu.trace_start"() <{level = 10 : i32, message = "bqd,bkd->bqk"}> : () -> ()
    %cst_23 = arith.constant dense<0.000000e+00> : vector<2x8x8xf32>
    %70 = tpu.matmul %67, %68, %cst_23 {dimension_numbers = #tpu.dot_dimension_numbers<[2], [2], [1], [1], [0, 0, 0, 1, 1, 1], [0], [0]>} : vector<2x8x8xbf16>, vector<2x8x8xbf16>, vector<2x8x8xf32> -> vector<2x8x8xf32>
    "tpu.trace_stop"() : () -> ()
    %cst_24 = arith.constant 0.353553385 : f32
    %71 = vector.broadcast %cst_24 : f32 to vector<2x8x8xf32>
    %72 = arith.mulf %70, %71 : vector<2x8x8xf32>
    %73 = arith.addf %72, %19 : vector<2x8x8xf32>
    %cst_25 = arith.constant dense<0xFF800000> : vector<2x8xf32>
    %74 = vector.multi_reduction <maximumf>, %73, %cst_25 [2] : vector<2x8x8xf32> to vector<2x8xf32>
    %75 = vector.shape_cast %74 : vector<2x8xf32> to vector<2x8x1xf32>
    %76 = vector.broadcast %75 : vector<2x8x1xf32> to vector<2x8x8xf32>
    %77 = arith.subf %73, %76 : vector<2x8x8xf32>
    %78 = math.exp %77 : vector<2x8x8xf32>
    %cst_26 = arith.constant dense<0.000000e+00> : vector<2x8xf32>
    %79 = vector.multi_reduction <add>, %78, %cst_26 [2] : vector<2x8x8xf32> to vector<2x8xf32>
    %80 = vector.shape_cast %79 : vector<2x8xf32> to vector<2x8x1xf32>
    %81 = tpu.reciprocal %80 {approx = true} : vector<2x8x1xf32> -> vector<2x8x1xf32>
    %82 = vector.broadcast %81 : vector<2x8x1xf32> to vector<2x8x8xf32>
    %83 = arith.mulf %78, %82 : vector<2x8x8xf32>
    %84 = arith.truncf %83 : vector<2x8x8xf32> to vector<2x8x8xbf16>
    "tpu.trace_start"() <{level = 10 : i32, message = "bqk,bkd->bqd"}> : () -> ()
    %cst_27 = arith.constant dense<0.000000e+00> : vector<2x8x8xf32>
    %85 = tpu.matmul %84, %69, %cst_27 {dimension_numbers = #tpu.dot_dimension_numbers<[2], [1], [1], [2], [0, 0, 0, 1, 1, 2], [0], [0]>} : vector<2x8x8xbf16>, vector<2x8x8xbf16>, vector<2x8x8xf32> -> vector<2x8x8xf32>
    "tpu.trace_stop"() : () -> ()
    %86 = vector.extract_strided_slice %12 {offsets = [0, 0, 24], sizes = [2, 8, 8], strides = [1, 1, 1]} : vector<2x8x96xf32> to vector<2x8x8xf32>
    %87 = vector.extract_strided_slice %12 {offsets = [0, 0, 56], sizes = [2, 8, 8], strides = [1, 1, 1]} : vector<2x8x96xf32> to vector<2x8x8xf32>
    %88 = vector.extract_strided_slice %12 {offsets = [0, 0, 88], sizes = [2, 8, 8], strides = [1, 1, 1]} : vector<2x8x96xf32> to vector<2x8x8xf32>
    %89 = arith.truncf %86 : vector<2x8x8xf32> to vector<2x8x8xbf16>
    %90 = arith.truncf %87 : vector<2x8x8xf32> to vector<2x8x8xbf16>
    %91 = arith.truncf %88 : vector<2x8x8xf32> to vector<2x8x8xbf16>
    "tpu.trace_start"() <{level = 10 : i32, message = "bqd,bkd->bqk"}> : () -> ()
    %cst_28 = arith.constant dense<0.000000e+00> : vector<2x8x8xf32>
    %92 = tpu.matmul %89, %90, %cst_28 {dimension_numbers = #tpu.dot_dimension_numbers<[2], [2], [1], [1], [0, 0, 0, 1, 1, 1], [0], [0]>} : vector<2x8x8xbf16>, vector<2x8x8xbf16>, vector<2x8x8xf32> -> vector<2x8x8xf32>
    "tpu.trace_stop"() : () -> ()
    %cst_29 = arith.constant 0.353553385 : f32
    %93 = vector.broadcast %cst_29 : f32 to vector<2x8x8xf32>
    %94 = arith.mulf %92, %93 : vector<2x8x8xf32>
    %95 = arith.addf %94, %19 : vector<2x8x8xf32>
    %cst_30 = arith.constant dense<0xFF800000> : vector<2x8xf32>
    %96 = vector.multi_reduction <maximumf>, %95, %cst_30 [2] : vector<2x8x8xf32> to vector<2x8xf32>
    %97 = vector.shape_cast %96 : vector<2x8xf32> to vector<2x8x1xf32>
    %98 = vector.broadcast %97 : vector<2x8x1xf32> to vector<2x8x8xf32>
    %99 = arith.subf %95, %98 : vector<2x8x8xf32>
    %100 = math.exp %99 : vector<2x8x8xf32>
    %cst_31 = arith.constant dense<0.000000e+00> : vector<2x8xf32>
    %101 = vector.multi_reduction <add>, %100, %cst_31 [2] : vector<2x8x8xf32> to vector<2x8xf32>
    %102 = vector.shape_cast %101 : vector<2x8xf32> to vector<2x8x1xf32>
    %103 = tpu.reciprocal %102 {approx = true} : vector<2x8x1xf32> -> vector<2x8x1xf32>
    %104 = vector.broadcast %103 : vector<2x8x1xf32> to vector<2x8x8xf32>
    %105 = arith.mulf %100, %104 : vector<2x8x8xf32>
    %106 = arith.truncf %105 : vector<2x8x8xf32> to vector<2x8x8xbf16>
    "tpu.trace_start"() <{level = 10 : i32, message = "bqk,bkd->bqd"}> : () -> ()
    %cst_32 = arith.constant dense<0.000000e+00> : vector<2x8x8xf32>
    %107 = tpu.matmul %106, %91, %cst_32 {dimension_numbers = #tpu.dot_dimension_numbers<[2], [1], [1], [2], [0, 0, 0, 1, 1, 2], [0], [0]>} : vector<2x8x8xbf16>, vector<2x8x8xbf16>, vector<2x8x8xf32> -> vector<2x8x8xf32>
    "tpu.trace_stop"() : () -> ()
    %108 = tpu.concatenate %41, %63, %85, %107 in 2 : vector<2x8x8xf32>, vector<2x8x8xf32>, vector<2x8x8xf32>, vector<2x8x8xf32> -> vector<2x8x32xf32>
    %109 = vector.shape_cast %108 : vector<2x8x32xf32> to vector<16x32xf32>
    %110 = arith.truncf %109 : vector<16x32xf32> to vector<16x32xbf16>
    %c0_33 = arith.constant 0 : index
    %c0_34 = arith.constant 0 : index
    %c0_35 = arith.constant 0 : index
    %111 = vector.load %arg6[%c0_33, %c0_34, %c0_35] : memref<1x32x32xbf16, #tpu.memory_space<vmem>>, vector<1x32x32xbf16>
    %112 = vector.shape_cast %111 : vector<1x32x32xbf16> to vector<32x32xbf16>
    %cst_36 = arith.constant dense<0.000000e+00> : vector<16x32xf32>
    %113 = tpu.matmul %110, %112, %cst_36 {dimension_numbers = #tpu.dot_dimension_numbers<[1], [0], [0], [1], [0, 0, 1, 1], [], []>} : vector<16x32xbf16>, vector<32x32xbf16>, vector<16x32xf32> -> vector<16x32xf32>
    %c0_37 = arith.constant 0 : index
    %c0_38 = arith.constant 0 : index
    %c0_39 = arith.constant 0 : index
    %114 = vector.load %arg7[%c0_37, %c0_38, %c0_39] : memref<1x1x32xf32, #tpu.memory_space<vmem>>, vector<1x1x32xf32>
    %115 = vector.shape_cast %114 : vector<1x1x32xf32> to vector<1x32xf32>
    %116 = vector.broadcast %115 : vector<1x32xf32> to vector<16x32xf32>
    %117 = arith.addf %113, %116 : vector<16x32xf32>
    %118 = arith.addf %3, %117 : vector<16x32xf32>
    %c0_40 = arith.constant 0 : index
    %c0_41 = arith.constant 0 : index
    %c0_42 = arith.constant 0 : index
    %119 = vector.load %arg8[%c0_40, %c0_41, %c0_42] : memref<1x1x32xf32, #tpu.memory_space<vmem>>, vector<1x1x32xf32>
    %120 = vector.shape_cast %119 : vector<1x1x32xf32> to vector<1x32xf32>
    %c0_43 = arith.constant 0 : index
    %c0_44 = arith.constant 0 : index
    %c0_45 = arith.constant 0 : index
    %121 = vector.load %arg9[%c0_43, %c0_44, %c0_45] : memref<1x1x32xf32, #tpu.memory_space<vmem>>, vector<1x1x32xf32>
    %122 = vector.shape_cast %121 : vector<1x1x32xf32> to vector<1x32xf32>
    %cst_46 = arith.constant dense<0.000000e+00> : vector<16xf32>
    %123 = vector.multi_reduction <add>, %118, %cst_46 [1] : vector<16x32xf32> to vector<16xf32>
    %124 = vector.shape_cast %123 : vector<16xf32> to vector<16x1xf32>
    %cst_47 = arith.constant 3.200000e+01 : f32
    %125 = vector.broadcast %cst_47 : f32 to vector<16x1xf32>
    %126 = arith.divf %124, %125 : vector<16x1xf32>
    %127 = vector.broadcast %126 : vector<16x1xf32> to vector<16x32xf32>
    %128 = arith.subf %118, %127 : vector<16x32xf32>
    %129 = arith.mulf %128, %128 : vector<16x32xf32>
    %cst_48 = arith.constant dense<0.000000e+00> : vector<16xf32>
    %130 = vector.multi_reduction <add>, %129, %cst_48 [1] : vector<16x32xf32> to vector<16xf32>
    %131 = vector.shape_cast %130 : vector<16xf32> to vector<16x1xf32>
    %cst_49 = arith.constant 3.200000e+01 : f32
    %132 = vector.broadcast %cst_49 : f32 to vector<16x1xf32>
    %133 = arith.divf %131, %132 : vector<16x1xf32>
    %134 = vector.broadcast %126 : vector<16x1xf32> to vector<16x32xf32>
    %135 = arith.subf %118, %134 : vector<16x32xf32>
    %cst_50 = arith.constant 9.99999974E-6 : f32
    %136 = vector.broadcast %cst_50 : f32 to vector<16x1xf32>
    %137 = arith.addf %133, %136 : vector<16x1xf32>
    %138 = math.rsqrt %137 : vector<16x1xf32>
    %139 = vector.broadcast %138 : vector<16x1xf32> to vector<16x32xf32>
    %140 = arith.mulf %135, %139 : vector<16x32xf32>
    %141 = vector.broadcast %120 : vector<1x32xf32> to vector<16x32xf32>
    %142 = arith.mulf %140, %141 : vector<16x32xf32>
    %143 = vector.broadcast %122 : vector<1x32xf32> to vector<16x32xf32>
    %144 = arith.addf %142, %143 : vector<16x32xf32>
    %145 = arith.truncf %144 : vector<16x32xf32> to vector<16x32xbf16>
    %c0_51 = arith.constant 0 : index
    %c0_52 = arith.constant 0 : index
    %c0_53 = arith.constant 0 : index
    %146 = vector.load %arg10[%c0_51, %c0_52, %c0_53] : memref<1x32x64xbf16, #tpu.memory_space<vmem>>, vector<1x32x64xbf16>
    %147 = vector.shape_cast %146 : vector<1x32x64xbf16> to vector<32x64xbf16>
    %cst_54 = arith.constant dense<0.000000e+00> : vector<16x64xf32>
    %148 = tpu.matmul %145, %147, %cst_54 {dimension_numbers = #tpu.dot_dimension_numbers<[1], [0], [0], [1], [0, 0, 1, 1], [], []>} : vector<16x32xbf16>, vector<32x64xbf16>, vector<16x64xf32> -> vector<16x64xf32>
    %c0_55 = arith.constant 0 : index
    %c0_56 = arith.constant 0 : index
    %c0_57 = arith.constant 0 : index
    %149 = vector.load %arg11[%c0_55, %c0_56, %c0_57] : memref<1x1x64xf32, #tpu.memory_space<vmem>>, vector<1x1x64xf32>
    %150 = vector.shape_cast %149 : vector<1x1x64xf32> to vector<1x64xf32>
    %151 = vector.broadcast %150 : vector<1x64xf32> to vector<16x64xf32>
    %152 = arith.addf %148, %151 : vector<16x64xf32>
    %cst_58 = arith.constant 0.000000e+00 : f32
    %153 = vector.broadcast %cst_58 : f32 to vector<16x64xf32>
    %154 = arith.maximumf %152, %153 : vector<16x64xf32>
    %155 = arith.truncf %154 : vector<16x64xf32> to vector<16x64xbf16>
    %c0_59 = arith.constant 0 : index
    %c0_60 = arith.constant 0 : index
    %c0_61 = arith.constant 0 : index
    %156 = vector.load %arg12[%c0_59, %c0_60, %c0_61] : memref<1x64x32xbf16, #tpu.memory_space<vmem>>, vector<1x64x32xbf16>
    %157 = vector.shape_cast %156 : vector<1x64x32xbf16> to vector<64x32xbf16>
    %cst_62 = arith.constant dense<0.000000e+00> : vector<16x32xf32>
    %158 = tpu.matmul %155, %157, %cst_62 {dimension_numbers = #tpu.dot_dimension_numbers<[1], [0], [0], [1], [0, 0, 1, 1], [], []>} : vector<16x64xbf16>, vector<64x32xbf16>, vector<16x32xf32> -> vector<16x32xf32>
    %c0_63 = arith.constant 0 : index
    %c0_64 = arith.constant 0 : index
    %c0_65 = arith.constant 0 : index
    %159 = vector.load %arg13[%c0_63, %c0_64, %c0_65] : memref<1x1x32xf32, #tpu.memory_space<vmem>>, vector<1x1x32xf32>
    %160 = vector.shape_cast %159 : vector<1x1x32xf32> to vector<1x32xf32>
    %161 = vector.broadcast %160 : vector<1x32xf32> to vector<16x32xf32>
    %162 = arith.addf %158, %161 : vector<16x32xf32>
    %163 = arith.addf %144, %162 : vector<16x32xf32>
    %c0_66 = arith.constant 0 : index
    %c0_67 = arith.constant 0 : index
    %c0_68 = arith.constant 0 : index
    %164 = vector.load %arg14[%c0_66, %c0_67, %c0_68] : memref<1x1x32xf32, #tpu.memory_space<vmem>>, vector<1x1x32xf32>
    %165 = vector.shape_cast %164 : vector<1x1x32xf32> to vector<1x32xf32>
    %c0_69 = arith.constant 0 : index
    %c0_70 = arith.constant 0 : index
    %c0_71 = arith.constant 0 : index
    %166 = vector.load %arg15[%c0_69, %c0_70, %c0_71] : memref<1x1x32xf32, #tpu.memory_space<vmem>>, vector<1x1x32xf32>
    %167 = vector.shape_cast %166 : vector<1x1x32xf32> to vector<1x32xf32>
    %cst_72 = arith.constant dense<0.000000e+00> : vector<16xf32>
    %168 = vector.multi_reduction <add>, %163, %cst_72 [1] : vector<16x32xf32> to vector<16xf32>
    %169 = vector.shape_cast %168 : vector<16xf32> to vector<16x1xf32>
    %cst_73 = arith.constant 3.200000e+01 : f32
    %170 = vector.broadcast %cst_73 : f32 to vector<16x1xf32>
    %171 = arith.divf %169, %170 : vector<16x1xf32>
    %172 = vector.broadcast %171 : vector<16x1xf32> to vector<16x32xf32>
    %173 = arith.subf %163, %172 : vector<16x32xf32>
    %174 = arith.mulf %173, %173 : vector<16x32xf32>
    %cst_74 = arith.constant dense<0.000000e+00> : vector<16xf32>
    %175 = vector.multi_reduction <add>, %174, %cst_74 [1] : vector<16x32xf32> to vector<16xf32>
    %176 = vector.shape_cast %175 : vector<16xf32> to vector<16x1xf32>
    %cst_75 = arith.constant 3.200000e+01 : f32
    %177 = vector.broadcast %cst_75 : f32 to vector<16x1xf32>
    %178 = arith.divf %176, %177 : vector<16x1xf32>
    %179 = vector.broadcast %171 : vector<16x1xf32> to vector<16x32xf32>
    %180 = arith.subf %163, %179 : vector<16x32xf32>
    %cst_76 = arith.constant 9.99999974E-6 : f32
    %181 = vector.broadcast %cst_76 : f32 to vector<16x1xf32>
    %182 = arith.addf %178, %181 : vector<16x1xf32>
    %183 = math.rsqrt %182 : vector<16x1xf32>
    %184 = vector.broadcast %183 : vector<16x1xf32> to vector<16x32xf32>
    %185 = arith.mulf %180, %184 : vector<16x32xf32>
    %186 = vector.broadcast %165 : vector<1x32xf32> to vector<16x32xf32>
    %187 = arith.mulf %185, %186 : vector<16x32xf32>
    %188 = vector.broadcast %167 : vector<1x32xf32> to vector<16x32xf32>
    %189 = arith.addf %187, %188 : vector<16x32xf32>
    %c0_77 = arith.constant 0 : index
    %c0_78 = arith.constant 0 : index
    %190 = vector.load %arg16[%c0_77, %c0_78] : memref<16x32xf32, #tpu.memory_space<vmem>>, vector<16x32xf32>
    tpu.vector_store %arg16[%c0_77, %c0_78], %189 {strides = array<i32>} : memref<16x32xf32, #tpu.memory_space<vmem>>, vector<16x32xf32>,
    return
  }
  func.func @transform_0(%arg0: i32, %arg1: i32) -> (i32, i32) {
    %c0_i32 = arith.constant 0 : i32
    %c0_i32_0 = arith.constant 0 : i32
    return %arg0, %c0_i32 : i32, i32
  }
  func.func @transform_1(%arg0: i32, %arg1: i32) -> (i32, i32, i32) {
    %c0_i32 = arith.constant 0 : i32
    %c0_i32_0 = arith.constant 0 : i32
    %c0_i32_1 = arith.constant 0 : i32
    return %arg0, %c0_i32, %c0_i32_0 : i32, i32, i32
  }
  func.func @transform_2(%arg0: i32, %arg1: i32) -> (i32, i32, i32) {
    %c0_i32 = arith.constant 0 : i32
    %c0_i32_0 = arith.constant 0 : i32
    %c0_i32_1 = arith.constant 0 : i32
    return %arg1, %c0_i32, %c0_i32_0 : i32, i32, i32
  }
  func.func @transform_3(%arg0: i32, %arg1: i32) -> (i32, i32, i32) {
    %c0_i32 = arith.constant 0 : i32
    %c0_i32_0 = arith.constant 0 : i32
    %c0_i32_1 = arith.constant 0 : i32
    return %arg1, %c0_i32, %c0_i32_0 : i32, i32, i32
  }
  func.func @transform_4(%arg0: i32, %arg1: i32) -> (i32, i32, i32) {
    %c0_i32 = arith.constant 0 : i32
    %c0_i32_0 = arith.constant 0 : i32
    %c0_i32_1 = arith.constant 0 : i32
    return %arg1, %c0_i32, %c0_i32_0 : i32, i32, i32
  }
  func.func @transform_5(%arg0: i32, %arg1: i32) -> (i32, i32, i32) {
    %c0_i32 = arith.constant 0 : i32
    %c0_i32_0 = arith.constant 0 : i32
    %c0_i32_1 = arith.constant 0 : i32
    return %arg1, %c0_i32, %c0_i32_0 : i32, i32, i32
  }
  func.func @transform_6(%arg0: i32, %arg1: i32) -> (i32, i32, i32) {
    %c0_i32 = arith.constant 0 : i32
    %c0_i32_0 = arith.constant 0 : i32
    %c0_i32_1 = arith.constant 0 : i32
    return %arg1, %c0_i32, %c0_i32_0 : i32, i32, i32
  }
  func.func @transform_7(%arg0: i32, %arg1: i32) -> (i32, i32, i32) {
    %c0_i32 = arith.constant 0 : i32
    %c0_i32_0 = arith.constant 0 : i32
    %c0_i32_1 = arith.constant 0 : i32
    return %arg1, %c0_i32, %c0_i32_0 : i32, i32, i32
  }
  func.func @transform_8(%arg0: i32, %arg1: i32) -> (i32, i32, i32) {
    %c0_i32 = arith.constant 0 : i32
    %c0_i32_0 = arith.constant 0 : i32
    %c0_i32_1 = arith.constant 0 : i32
    return %arg1, %c0_i32, %c0_i32_0 : i32, i32, i32
  }
  func.func @transform_9(%arg0: i32, %arg1: i32) -> (i32, i32, i32) {
    %c0_i32 = arith.constant 0 : i32
    %c0_i32_0 = arith.constant 0 : i32
    %c0_i32_1 = arith.constant 0 : i32
    return %arg1, %c0_i32, %c0_i32_0 : i32, i32, i32
  }
  func.func @transform_10(%arg0: i32, %arg1: i32) -> (i32, i32, i32) {
    %c0_i32 = arith.constant 0 : i32
    %c0_i32_0 = arith.constant 0 : i32
    %c0_i32_1 = arith.constant 0 : i32
    return %arg1, %c0_i32, %c0_i32_0 : i32, i32, i32
  }
  func.func @transform_11(%arg0: i32, %arg1: i32) -> (i32, i32, i32) {
    %c0_i32 = arith.constant 0 : i32
    %c0_i32_0 = arith.constant 0 : i32
    %c0_i32_1 = arith.constant 0 : i32
    return %arg1, %c0_i32, %c0_i32_0 : i32, i32, i32
  }
  func.func @transform_12(%arg0: i32, %arg1: i32) -> (i32, i32, i32) {
    %c0_i32 = arith.constant 0 : i32
    %c0_i32_0 = arith.constant 0 : i32
    %c0_i32_1 = arith.constant 0 : i32
    return %arg1, %c0_i32, %c0_i32_0 : i32, i32, i32
  }
  func.func @transform_13(%arg0: i32, %arg1: i32) -> (i32, i32, i32) {
    %c0_i32 = arith.constant 0 : i32
    %c0_i32_0 = arith.constant 0 : i32
    %c0_i32_1 = arith.constant 0 : i32
    return %arg1, %c0_i32, %c0_i32_0 : i32, i32, i32
  }
  func.func @transform_14(%arg0: i32, %arg1: i32) -> (i32, i32) {
    %c0_i32 = arith.constant 0 : i32
    %c0_i32_0 = arith.constant 0 : i32
    return %arg0, %c0_i32 : i32, i32
  }
}

</mosaic_0001>

<llo_original>
// kernel: tpu_custom_call.1
$region0: #{tpu_custom_call.1}
  #allocation0 [shape = 'u32[]', space=smem, size = 0x4, offset = 0x4, fixed_abs, tag = 'smem constant byte address 0x4 - core index']
  #allocation1 [shape = 'u32[144,128]{1,0:T(1,128)}', space=vmem, size = 0x12000, scoped, tag = 'internal scratch']
  %s0 = inlined_call_operand.hbm [shape: f32[16,32], index: 0, kind: input, shape index: {}]
  %s1 = inlined_call_operand.hbm [shape: f32[2,1,8], index: 1, kind: input, shape index: {}]
  %s2 = inlined_call_operand.vmem [shape: bf16[2,32,96], index: 2, kind: input, shape index: {}]
  %s3 = inlined_call_operand.vmem [shape: f32[2,1,96], index: 3, kind: input, shape index: {}]
  %s4 = inlined_call_operand.vmem [shape: bf16[2,32,32], index: 4, kind: input, shape index: {}]
  %s5 = inlined_call_operand.vmem [shape: f32[2,1,32], index: 5, kind: input, shape index: {}]
  %s6 = inlined_call_operand.vmem [shape: f32[2,1,32], index: 6, kind: input, shape index: {}]
  %s7 = inlined_call_operand.vmem [shape: f32[2,1,32], index: 7, kind: input, shape index: {}]
  %s8 = inlined_call_operand.vmem [shape: bf16[2,32,64], index: 8, kind: input, shape index: {}]
  %s9 = inlined_call_operand.vmem [shape: f32[2,1,64], index: 9, kind: input, shape index: {}]
  %s10 = inlined_call_operand.vmem [shape: bf16[2,64,32], index: 10, kind: input, shape index: {}]
  %s11 = inlined_call_operand.vmem [shape: f32[2,1,32], index: 11, kind: input, shape index: {}]
  %s12 = inlined_call_operand.vmem [shape: f32[2,1,32], index: 12, kind: input, shape index: {}]
  %s13 = inlined_call_operand.vmem [shape: f32[2,1,32], index: 13, kind: input, shape index: {}]
  %s14 = inlined_call_operand.hbm [shape: f32[16,32], index: 14, kind: output, shape index: {}]
  %s15 = sld [smem:[#allocation0]]
  $region101: #{tpu_custom_call.1} parent=0
    _
  %s17 = ssub.s32 1, %s15
  %s18 = scalar_select 0, %s17, %s15
  $region1: #{tpu_custom_call.1} parent=0
    #allocation2 [shape = 'u8[8192]{0}', space=vmem, size = 0x2000, scoped, tag = 'input window, operand 0, single buffered']
    #allocation3 [shape = 's32[2]{0}', space=sflag, size = 0x8, scoped, tag = 'scoped memory for tpu_custom_call.1']
    #allocation4 [shape = 's32[2]{0}', space=sflag, size = 0x8, scoped, tag = 'scoped memory for tpu_custom_call.1']
    #allocation5 [shape = 'u8[1024]{0}', space=vmem, size = 0x400, scoped, tag = 'input window, operand 1, single buffered']
    #allocation6 [shape = 's32[1]{0}', space=sflag, size = 0x4, scoped, tag = 'scoped memory for tpu_custom_call.1']
    #allocation7 [shape = 'u8[8192]{0}', space=vmem, size = 0x2000, scoped, tag = 'output window, operand 0, single buffered']
    %19 = vsyncpa [#allocation3], 0
    %20 = vsyncpa [#allocation6], 0
    %21 = vsyncpa [#allocation4], 0
    loop: start=0, step=1, limit=4
    $region2: #{tpu_custom_call.1} parent=1 // loop_pre_header
      _
    $region3: #{tpu_custom_call.1} parent=1 // loop_header
      %s23 = sphi 0, %s27
      %p24 = scmp.ge.s32.totalorder %s23, 4
      %s30 = sphi 0, %s42
      %s31 = sphi 0, %s38
      %s32 = sphi 0, %s30
      %s33 = sphi 0, %s31
      %s34 = sphi 0, %s32
      %s35 = sphi 0, %s33
      %s45 = sphi 0, %s47
      %s48 = sphi 0, %s45
      %s49 = sphi 0, %s48
      %s65 = sphi 0, %s49
      %s71 = sphi 0, %s73
      %s74 = sphi 0, %s71
      %s75 = sphi 0, %s74
      %s91 = sphi 0, %s75
      %s97 = sphi 0, %s99
      %s100 = sphi 0, %s97
      %s101 = sphi 0, %s100
      %s117 = sphi 0, %s101
      %s123 = sphi 0, %s125
      %s126 = sphi 0, %s123
      %s127 = sphi 0, %s126
      %s143 = sphi 0, %s127
      %s149 = sphi 0, %s151
      %s152 = sphi 0, %s149
      %s153 = sphi 0, %s152
      %s169 = sphi 0, %s153
      %s175 = sphi 0, %s177
      %s178 = sphi 0, %s175
      %s179 = sphi 0, %s178
      %s195 = sphi 0, %s179
      %s201 = sphi 0, %s203
      %s204 = sphi 0, %s201
      %s205 = sphi 0, %s204
      %s221 = sphi 0, %s205
      %s227 = sphi 0, %s229
      %s230 = sphi 0, %s227
      %s231 = sphi 0, %s230
      %s247 = sphi 0, %s231
      %s253 = sphi 0, %s255
      %s256 = sphi 0, %s253
      %s257 = sphi 0, %s256
      %s273 = sphi 0, %s257
      %s279 = sphi 0, %s281
      %s282 = sphi 0, %s279
      %s283 = sphi 0, %s282
      %s299 = sphi 0, %s283
      %s305 = sphi 0, %s307
      %s308 = sphi 0, %s305
      %s309 = sphi 0, %s308
      %s325 = sphi 0, %s309
      %s331 = sphi 0, %s333
      %s334 = sphi 0, %s331
      %s335 = sphi 0, %s334
      %s351 = sphi 0, %s335
      %s357 = sphi 0, %s359
      %s360 = sphi 0, %s357
      %s361 = sphi 0, %s360
      %s377 = sphi 0, %s361
      %s383 = sphi 0, %s385
      %s386 = sphi 0, %s383
      %s387 = sphi 0, %s386
      %s403 = sphi 0, %s387
      %s409 = sphi 0, %s411
      %s412 = sphi 0, %s409
      %s413 = sphi 0, %s412
      %s429 = sphi 0, %s413
    $region4: #{tpu_custom_call.1} parent=1 // loop_header_branch
      %26 = sbr.rel (%p24) target = $region8
    $region5: #{tpu_custom_call.1} parent=1 // loop_body
      %s28 = ssub.s32 %s23, 1
      %s29 = ssub.s32 %s23, 2
      %s36 = sadd.s32 1, %s31
      %p37 = scmp.ge.s32.totalorder %s36, 2
      %s38 = scalar_select %p37, 0, %s36
      %s39 = sadd.s32 1, %s30
      %s40 = scalar_select %p37, %s39, %s30
      %p41 = scmp.ge.s32.totalorder %s40, 1
      %s42 = scalar_select %p41, 0, %s40
      %s43 = ssub.s32 %s30, %s42
      %p44 = scmp.eq.s32.totalorder %s43, 0
      %s46 = sadd.s32 %s45, 1
      %s47 = scalar_select %p44, %s45, %s46
      %p50 = pneg %p44
      %p51 = scmp.eq.s32.totalorder %s23, 1
      %p52 = por %p50, %p51
      %p53 = scmp.ne.s32.totalorder %s45, %s48
      %p54 = scmp.eq.s32.totalorder %s23, 0
      %p55 = por %p53, %p54
      %p56 = scmp.ne.s32.totalorder %s45, %s48
      %p57 = scmp.eq.s32.totalorder %s28, 1
      %p58 = por %p56, %p57
      %p59 = scmp.ne.s32.totalorder %s48, %s49
      %p60 = scmp.eq.s32.totalorder %s28, 0
      %p61 = por %p59, %p60
      %p62 = scmp.ne.s32.totalorder %s48, %s49
      %p63 = scmp.eq.s32.totalorder %s29, 1
      %p64 = por %p62, %p63
      %p66 = scmp.ne.s32.totalorder %s49, %s65
      %p67 = scmp.eq.s32.totalorder %s29, 0
      %p68 = por %p66, %p67
      %s69 = ssub.s32 %s30, %s42
      %p70 = scmp.eq.s32.totalorder %s69, 0
      %s72 = sadd.s32 %s71, 1
      %s73 = scalar_select %p70, %s71, %s72
      %p76 = pneg %p70
      %p77 = scmp.eq.s32.totalorder %s23, 1
      %p78 = por %p76, %p77
      %p79 = scmp.ne.s32.totalorder %s71, %s74
      %p80 = scmp.eq.s32.totalorder %s23, 0
      %p81 = por %p79, %p80
      %p82 = scmp.ne.s32.totalorder %s71, %s74
      %p83 = scmp.eq.s32.totalorder %s28, 1
      %p84 = por %p82, %p83
      %p85 = scmp.ne.s32.totalorder %s74, %s75
      %p86 = scmp.eq.s32.totalorder %s28, 0
      %p87 = por %p85, %p86
      %p88 = scmp.ne.s32.totalorder %s74, %s75
      %p89 = scmp.eq.s32.totalorder %s29, 1
      %p90 = por %p88, %p89
      %p92 = scmp.ne.s32.totalorder %s75, %s91
      %p93 = scmp.eq.s32.totalorder %s29, 0
      %p94 = por %p92, %p93
      %s95 = ssub.s32 %s31, %s38
      %p96 = scmp.eq.s32.totalorder %s95, 0
      %s98 = sadd.s32 %s97, 1
      %s99 = scalar_select %p96, %s97, %s98
      %p102 = pneg %p96
      %p103 = scmp.eq.s32.totalorder %s23, 1
      %p104 = por %p102, %p103
      %p105 = scmp.ne.s32.totalorder %s97, %s100
      %p106 = scmp.eq.s32.totalorder %s23, 0
      %p107 = por %p105, %p106
      %p108 = scmp.ne.s32.totalorder %s97, %s100
      %p109 = scmp.eq.s32.totalorder %s28, 1
      %p110 = por %p108, %p109
      %p111 = scmp.ne.s32.totalorder %s100, %s101
      %p112 = scmp.eq.s32.totalorder %s28, 0
      %p113 = por %p111, %p112
      %p114 = scmp.ne.s32.totalorder %s100, %s101
      %p115 = scmp.eq.s32.totalorder %s29, 1
      %p116 = por %p114, %p115
      %p118 = scmp.ne.s32.totalorder %s101, %s117
      %p119 = scmp.eq.s32.totalorder %s29, 0
      %p120 = por %p118, %p119
      %s121 = ssub.s32 %s31, %s38
      %p122 = scmp.eq.s32.totalorder %s121, 0
      %s124 = sadd.s32 %s123, 1
      %s125 = scalar_select %p122, %s123, %s124
      %p128 = pneg %p122
      %p129 = scmp.eq.s32.totalorder %s23, 1
      %p130 = por %p128, %p129
      %p131 = scmp.ne.s32.totalorder %s123, %s126
      %p132 = scmp.eq.s32.totalorder %s23, 0
      %p133 = por %p131, %p132
      %p134 = scmp.ne.s32.totalorder %s123, %s126
      %p135 = scmp.eq.s32.totalorder %s28, 1
      %p136 = por %p134, %p135
      %p137 = scmp.ne.s32.totalorder %s126, %s127
      %p138 = scmp.eq.s32.totalorder %s28, 0
      %p139 = por %p137, %p138
      %p140 = scmp.ne.s32.totalorder %s126, %s127
      %p141 = scmp.eq.s32.totalorder %s29, 1
      %p142 = por %p140, %p141
      %p144 = scmp.ne.s32.totalorder %s127, %s143
      %p145 = scmp.eq.s32.totalorder %s29, 0
      %p146 = por %p144, %p145
      %s147 = ssub.s32 %s31, %s38
      %p148 = scmp.eq.s32.totalorder %s147, 0
      %s150 = sadd.s32 %s149, 1
      %s151 = scalar_select %p148, %s149, %s150
      %p154 = pneg %p148
      %p155 = scmp.eq.s32.totalorder %s23, 1
      %p156 = por %p154, %p155
      %p157 = scmp.ne.s32.totalorder %s149, %s152
      %p158 = scmp.eq.s32.totalorder %s23, 0
      %p159 = por %p157, %p158
      %p160 = scmp.ne.s32.totalorder %s149, %s152
      %p161 = scmp.eq.s32.totalorder %s28, 1
      %p162 = por %p160, %p161
      %p163 = scmp.ne.s32.totalorder %s152, %s153
      %p164 = scmp.eq.s32.totalorder %s28, 0
      %p165 = por %p163, %p164
      %p166 = scmp.ne.s32.totalorder %s152, %s153
      %p167 = scmp.eq.s32.totalorder %s29, 1
      %p168 = por %p166, %p167
      %p170 = scmp.ne.s32.totalorder %s153, %s169
      %p171 = scmp.eq.s32.totalorder %s29, 0
      %p172 = por %p170, %p171
      %s173 = ssub.s32 %s31, %s38
      %p174 = scmp.eq.s32.totalorder %s173, 0
      %s176 = sadd.s32 %s175, 1
      %s177 = scalar_select %p174, %s175, %s176
      %p180 = pneg %p174
      %p181 = scmp.eq.s32.totalorder %s23, 1
      %p182 = por %p180, %p181
      %p183 = scmp.ne.s32.totalorder %s175, %s178
      %p184 = scmp.eq.s32.totalorder %s23, 0
      %p185 = por %p183, %p184
      %p186 = scmp.ne.s32.totalorder %s175, %s178
      %p187 = scmp.eq.s32.totalorder %s28, 1
      %p188 = por %p186, %p187
      %p189 = scmp.ne.s32.totalorder %s178, %s179
      %p190 = scmp.eq.s32.totalorder %s28, 0
      %p191 = por %p189, %p190
      %p192 = scmp.ne.s32.totalorder %s178, %s179
      %p193 = scmp.eq.s32.totalorder %s29, 1
      %p194 = por %p192, %p193
      %p196 = scmp.ne.s32.totalorder %s179, %s195
      %p197 = scmp.eq.s32.totalorder %s29, 0
      %p198 = por %p196, %p197
      %s199 = ssub.s32 %s31, %s38
      %p200 = scmp.eq.s32.totalorder %s199, 0
      %s202 = sadd.s32 %s201, 1
      %s203 = scalar_select %p200, %s201, %s202
      %p206 = pneg %p200
      %p207 = scmp.eq.s32.totalorder %s23, 1
      %p208 = por %p206, %p207
      %p209 = scmp.ne.s32.totalorder %s201, %s204
      %p210 = scmp.eq.s32.totalorder %s23, 0
      %p211 = por %p209, %p210
      %p212 = scmp.ne.s32.totalorder %s201, %s204
      %p213 = scmp.eq.s32.totalorder %s28, 1
      %p214 = por %p212, %p213
      %p215 = scmp.ne.s32.totalorder %s204, %s205
      %p216 = scmp.eq.s32.totalorder %s28, 0
      %p217 = por %p215, %p216
      %p218 = scmp.ne.s32.totalorder %s204, %s205
      %p219 = scmp.eq.s32.totalorder %s29, 1
      %p220 = por %p218, %p219
      %p222 = scmp.ne.s32.totalorder %s205, %s221
      %p223 = scmp.eq.s32.totalorder %s29, 0
      %p224 = por %p222, %p223
      %s225 = ssub.s32 %s31, %s38
      %p226 = scmp.eq.s32.totalorder %s225, 0
      %s228 = sadd.s32 %s227, 1
      %s229 = scalar_select %p226, %s227, %s228
      %p232 = pneg %p226
      %p233 = scmp.eq.s32.totalorder %s23, 1
      %p234 = por %p232, %p233
      %p235 = scmp.ne.s32.totalorder %s227, %s230
      %p236 = scmp.eq.s32.totalorder %s23, 0
      %p237 = por %p235, %p236
      %p238 = scmp.ne.s32.totalorder %s227, %s230
      %p239 = scmp.eq.s32.totalorder %s28, 1
      %p240 = por %p238, %p239
      %p241 = scmp.ne.s32.totalorder %s230, %s231
      %p242 = scmp.eq.s32.totalorder %s28, 0
      %p243 = por %p241, %p242
      %p244 = scmp.ne.s32.totalorder %s230, %s231
      %p245 = scmp.eq.s32.totalorder %s29, 1
      %p246 = por %p244, %p245
      %p248 = scmp.ne.s32.totalorder %s231, %s247
      %p249 = scmp.eq.s32.totalorder %s29, 0
      %p250 = por %p248, %p249
      %s251 = ssub.s32 %s31, %s38
      %p252 = scmp.eq.s32.totalorder %s251, 0
      %s254 = sadd.s32 %s253, 1
      %s255 = scalar_select %p252, %s253, %s254
      %p258 = pneg %p252
      %p259 = scmp.eq.s32.totalorder %s23, 1
      %p260 = por %p258, %p259
      %p261 = scmp.ne.s32.totalorder %s253, %s256
      %p262 = scmp.eq.s32.totalorder %s23, 0
      %p263 = por %p261, %p262
      %p264 = scmp.ne.s32.totalorder %s253, %s256
      %p265 = scmp.eq.s32.totalorder %s28, 1
      %p266 = por %p264, %p265
      %p267 = scmp.ne.s32.totalorder %s256, %s257
      %p268 = scmp.eq.s32.totalorder %s28, 0
      %p269 = por %p267, %p268
      %p270 = scmp.ne.s32.totalorder %s256, %s257
      %p271 = scmp.eq.s32.totalorder %s29, 1
      %p272 = por %p270, %p271
      %p274 = scmp.ne.s32.totalorder %s257, %s273
      %p275 = scmp.eq.s32.totalorder %s29, 0
      %p276 = por %p274, %p275
      %s277 = ssub.s32 %s31, %s38
      %p278 = scmp.eq.s32.totalorder %s277, 0
      %s280 = sadd.s32 %s279, 1
      %s281 = scalar_select %p278, %s279, %s280
      %p284 = pneg %p278
      %p285 = scmp.eq.s32.totalorder %s23, 1
      %p286 = por %p284, %p285
      %p287 = scmp.ne.s32.totalorder %s279, %s282
      %p288 = scmp.eq.s32.totalorder %s23, 0
      %p289 = por %p287, %p288
      %p290 = scmp.ne.s32.totalorder %s279, %s282
      %p291 = scmp.eq.s32.totalorder %s28, 1
      %p292 = por %p290, %p291
      %p293 = scmp.ne.s32.totalorder %s282, %s283
      %p294 = scmp.eq.s32.totalorder %s28, 0
      %p295 = por %p293, %p294
      %p296 = scmp.ne.s32.totalorder %s282, %s283
      %p297 = scmp.eq.s32.totalorder %s29, 1
      %p298 = por %p296, %p297
      %p300 = scmp.ne.s32.totalorder %s283, %s299
      %p301 = scmp.eq.s32.totalorder %s29, 0
      %p302 = por %p300, %p301
      %s303 = ssub.s32 %s31, %s38
      %p304 = scmp.eq.s32.totalorder %s303, 0
      %s306 = sadd.s32 %s305, 1
      %s307 = scalar_select %p304, %s305, %s306
      %p310 = pneg %p304
      %p311 = scmp.eq.s32.totalorder %s23, 1
      %p312 = por %p310, %p311
      %p313 = scmp.ne.s32.totalorder %s305, %s308
      %p314 = scmp.eq.s32.totalorder %s23, 0
      %p315 = por %p313, %p314
      %p316 = scmp.ne.s32.totalorder %s305, %s308
      %p317 = scmp.eq.s32.totalorder %s28, 1
      %p318 = por %p316, %p317
      %p319 = scmp.ne.s32.totalorder %s308, %s309
      %p320 = scmp.eq.s32.totalorder %s28, 0
      %p321 = por %p319, %p320
      %p322 = scmp.ne.s32.totalorder %s308, %s309
      %p323 = scmp.eq.s32.totalorder %s29, 1
      %p324 = por %p322, %p323
      %p326 = scmp.ne.s32.totalorder %s309, %s325
      %p327 = scmp.eq.s32.totalorder %s29, 0
      %p328 = por %p326, %p327
      %s329 = ssub.s32 %s31, %s38
      %p330 = scmp.eq.s32.totalorder %s329, 0
      %s332 = sadd.s32 %s331, 1
      %s333 = scalar_select %p330, %s331, %s332
      %p336 = pneg %p330
      %p337 = scmp.eq.s32.totalorder %s23, 1
      %p338 = por %p336, %p337
      %p339 = scmp.ne.s32.totalorder %s331, %s334
      %p340 = scmp.eq.s32.totalorder %s23, 0
      %p341 = por %p339, %p340
      %p342 = scmp.ne.s32.totalorder %s331, %s334
      %p343 = scmp.eq.s32.totalorder %s28, 1
      %p344 = por %p342, %p343
      %p345 = scmp.ne.s32.totalorder %s334, %s335
      %p346 = scmp.eq.s32.totalorder %s28, 0
      %p347 = por %p345, %p346
      %p348 = scmp.ne.s32.totalorder %s334, %s335
      %p349 = scmp.eq.s32.totalorder %s29, 1
      %p350 = por %p348, %p349
      %p352 = scmp.ne.s32.totalorder %s335, %s351
      %p353 = scmp.eq.s32.totalorder %s29, 0
      %p354 = por %p352, %p353
      %s355 = ssub.s32 %s31, %s38
      %p356 = scmp.eq.s32.totalorder %s355, 0
      %s358 = sadd.s32 %s357, 1
      %s359 = scalar_select %p356, %s357, %s358
      %p362 = pneg %p356
      %p363 = scmp.eq.s32.totalorder %s23, 1
      %p364 = por %p362, %p363
      %p365 = scmp.ne.s32.totalorder %s357, %s360
      %p366 = scmp.eq.s32.totalorder %s23, 0
      %p367 = por %p365, %p366
      %p368 = scmp.ne.s32.totalorder %s357, %s360
      %p369 = scmp.eq.s32.totalorder %s28, 1
      %p370 = por %p368, %p369
      %p371 = scmp.ne.s32.totalorder %s360, %s361
      %p372 = scmp.eq.s32.totalorder %s28, 0
      %p373 = por %p371, %p372
      %p374 = scmp.ne.s32.totalorder %s360, %s361
      %p375 = scmp.eq.s32.totalorder %s29, 1
      %p376 = por %p374, %p375
      %p378 = scmp.ne.s32.totalorder %s361, %s377
      %p379 = scmp.eq.s32.totalorder %s29, 0
      %p380 = por %p378, %p379
      %s381 = ssub.s32 %s31, %s38
      %p382 = scmp.eq.s32.totalorder %s381, 0
      %s384 = sadd.s32 %s383, 1
      %s385 = scalar_select %p382, %s383, %s384
      %p388 = pneg %p382
      %p389 = scmp.eq.s32.totalorder %s23, 1
      %p390 = por %p388, %p389
      %p391 = scmp.ne.s32.totalorder %s383, %s386
      %p392 = scmp.eq.s32.totalorder %s23, 0
      %p393 = por %p391, %p392
      %p394 = scmp.ne.s32.totalorder %s383, %s386
      %p395 = scmp.eq.s32.totalorder %s28, 1
      %p396 = por %p394, %p395
      %p397 = scmp.ne.s32.totalorder %s386, %s387
      %p398 = scmp.eq.s32.totalorder %s28, 0
      %p399 = por %p397, %p398
      %p400 = scmp.ne.s32.totalorder %s386, %s387
      %p401 = scmp.eq.s32.totalorder %s29, 1
      %p402 = por %p400, %p401
      %p404 = scmp.ne.s32.totalorder %s387, %s403
      %p405 = scmp.eq.s32.totalorder %s29, 0
      %p406 = por %p404, %p405
      %s407 = ssub.s32 %s30, %s42
      %p408 = scmp.eq.s32.totalorder %s407, 0
      %s410 = sadd.s32 %s409, 1
      %s411 = scalar_select %p408, %s409, %s410
      %p414 = pneg %p408
      %p415 = scmp.eq.s32.totalorder %s23, 1
      %p416 = por %p414, %p415
      %p417 = scmp.ne.s32.totalorder %s409, %s412
      %p418 = scmp.eq.s32.totalorder %s23, 0
      %p419 = por %p417, %p418
      %p420 = scmp.ne.s32.totalorder %s409, %s412
      %p421 = scmp.eq.s32.totalorder %s28, 1
      %p422 = por %p420, %p421
      %p423 = scmp.ne.s32.totalorder %s412, %s413
      %p424 = scmp.eq.s32.totalorder %s28, 0
      %p425 = por %p423, %p424
      %p426 = scmp.ne.s32.totalorder %s412, %s413
      %p427 = scmp.eq.s32.totalorder %s29, 1
      %p428 = por %p426, %p427
      %p430 = scmp.ne.s32.totalorder %s413, %s429
      %p431 = scmp.eq.s32.totalorder %s29, 0
      %p432 = por %p430, %p431
      %p433 = scmp.le.s32.totalorder 1, %s23
      %p434 = scmp.lt.s32.totalorder %s23, 3
      %p435 = pnand %p433, %p434
      %p436 = pneg %p435
      // Predicated region
      $region9: #{tpu_custom_call.1} parent=5 // pred_check
        _
      $region10: #{tpu_custom_call.1} parent=5 // pred_check_branch
        %438 = sbr.rel (%p435) target = $region12
      $region11: #{tpu_custom_call.1} parent=5 // pred_region
        %s439 = ssub.s32 %s23, 1
        // Predicated region
        $region13: #{tpu_custom_call.1} parent=11 // pred_check
          %p440 = pneg %p61
        $region14: #{tpu_custom_call.1} parent=11 // pred_check_branch
          %442 = sbr.rel (%p440) target = $region16
        $region15: #{tpu_custom_call.1} parent=11 // pred_region
          %s443 = smul.u32 2, %s32
          %s445 = ssub.s32 256, 256
          %446 = vsyncadd [#allocation3], %s445
          %s447 = smul.addr %s443, 128
          %s448 = scalar_lea.hbm %s0, %s447
          %s449 = sshll.u32 [#allocation2], 4
          %s450 = int_to_ptr.vmem [resolvable:$true] %s449
          %455 = dma.hbm_to_vmem [thread:$0]  %s448, 256, %s450, [#allocation3], 128, 128, 8
        $region16: #{tpu_custom_call.1} parent=11 // pred_fallthru
          _
        // Predicated region
        $region17: #{tpu_custom_call.1} parent=11 // pred_check
          %p456 = pneg %p87
        $region18: #{tpu_custom_call.1} parent=11 // pred_check_branch
          %458 = sbr.rel (%p456) target = $region20
        $region19: #{tpu_custom_call.1} parent=11 // pred_region
          %s459 = smul.u32 2, %s32
          %s461 = ssub.s32 32, 32
          %462 = vsyncadd [#allocation6], %s461
          %s463 = smul.addr %s459, 16
          %s464 = scalar_lea.hbm %s1, %s463
          %s465 = sshll.u32 [#allocation5], 4
          %s466 = int_to_ptr.vmem [resolvable:$true] %s465
          %471 = dma.hbm_to_vmem [thread:$0]  %s464, 32, %s466, [#allocation6], 16, 16, 1
        $region20: #{tpu_custom_call.1} parent=11 // pred_fallthru
          _
      $region12: #{tpu_custom_call.1} parent=5 // pred_fallthru
        _
      %p472 = scmp.lt.s32.totalorder %s23, 2
      // Predicated region
      $region21: #{tpu_custom_call.1} parent=5 // pred_check
        %p473 = pneg %p472
      $region22: #{tpu_custom_call.1} parent=5 // pred_check_branch
        %475 = sbr.rel (%p473) target = $region24
      $region23: #{tpu_custom_call.1} parent=5 // pred_region
        // Predicated region
        $region25: #{tpu_custom_call.1} parent=23 // pred_check
          %p476 = pneg %p107
        $region26: #{tpu_custom_call.1} parent=23 // pred_check_branch
          %478 = sbr.rel (%p476) target = $region28
        $region27: #{tpu_custom_call.1} parent=23 // pred_region
          %p479 = scmp.lt.s32.totalorder %s31, 1
          %s480 = scalar_select %p479, %s31, 1
          %s481 = smul.addr %s480, 4
          %s482 = smul.addr %s481, 4
          %s483 = scalar_lea.vmem %s2, %s482
        $region28: #{tpu_custom_call.1} parent=23 // pred_fallthru
          _
        // Predicated region
        $region29: #{tpu_custom_call.1} parent=23 // pred_check
          %p484 = pneg %p133
        $region30: #{tpu_custom_call.1} parent=23 // pred_check_branch
          %486 = sbr.rel (%p484) target = $region32
        $region31: #{tpu_custom_call.1} parent=23 // pred_region
          %p487 = scmp.lt.s32.totalorder %s31, 1
          %s488 = scalar_select %p487, %s31, 1
          %s489 = scalar_lea.vmem %s3, %s488
        $region32: #{tpu_custom_call.1} parent=23 // pred_fallthru
          _
        // Predicated region
        $region33: #{tpu_custom_call.1} parent=23 // pred_check
          %p490 = pneg %p159
        $region34: #{tpu_custom_call.1} parent=23 // pred_check_branch
          %492 = sbr.rel (%p490) target = $region36
        $region35: #{tpu_custom_call.1} parent=23 // pred_region
          %p493 = scmp.lt.s32.totalorder %s31, 1
          %s494 = scalar_select %p493, %s31, 1
          %s495 = smul.addr %s494, 4
          %s496 = smul.addr %s495, 4
          %s497 = scalar_lea.vmem %s4, %s496
        $region36: #{tpu_custom_call.1} parent=23 // pred_fallthru
          _
        // Predicated region
        $region37: #{tpu_custom_call.1} parent=23 // pred_check
          %p498 = pneg %p185
        $region38: #{tpu_custom_call.1} parent=23 // pred_check_branch
          %500 = sbr.rel (%p498) target = $region40
        $region39: #{tpu_custom_call.1} parent=23 // pred_region
          %p501 = scmp.lt.s32.totalorder %s31, 1
          %s502 = scalar_select %p501, %s31, 1
          %s503 = scalar_lea.vmem %s5, %s502
        $region40: #{tpu_custom_call.1} parent=23 // pred_fallthru
          _
        // Predicated region
        $region41: #{tpu_custom_call.1} parent=23 // pred_check
          %p504 = pneg %p211
        $region42: #{tpu_custom_call.1} parent=23 // pred_check_branch
          %506 = sbr.rel (%p504) target = $region44
        $region43: #{tpu_custom_call.1} parent=23 // pred_region
          %p507 = scmp.lt.s32.totalorder %s31, 1
          %s508 = scalar_select %p507, %s31, 1
          %s509 = scalar_lea.vmem %s6, %s508
        $region44: #{tpu_custom_call.1} parent=23 // pred_fallthru
          _
        // Predicated region
        $region45: #{tpu_custom_call.1} parent=23 // pred_check
          %p510 = pneg %p237
        $region46: #{tpu_custom_call.1} parent=23 // pred_check_branch
          %512 = sbr.rel (%p510) target = $region48
        $region47: #{tpu_custom_call.1} parent=23 // pred_region
          %p513 = scmp.lt.s32.totalorder %s31, 1
          %s514 = scalar_select %p513, %s31, 1
          %s515 = scalar_lea.vmem %s7, %s514
        $region48: #{tpu_custom_call.1} parent=23 // pred_fallthru
          _
        // Predicated region
        $region49: #{tpu_custom_call.1} parent=23 // pred_check
          %p516 = pneg %p263
        $region50: #{tpu_custom_call.1} parent=23 // pred_check_branch
          %518 = sbr.rel (%p516) target = $region52
        $region51: #{tpu_custom_call.1} parent=23 // pred_region
          %p519 = scmp.lt.s32.totalorder %s31, 1
          %s520 = scalar_select %p519, %s31, 1
          %s521 = smul.addr %s520, 4
          %s522 = smul.addr %s521, 4
          %s523 = scalar_lea.vmem %s8, %s522
        $region52: #{tpu_custom_call.1} parent=23 // pred_fallthru
          _
        // Predicated region
        $region53: #{tpu_custom_call.1} parent=23 // pred_check
          %p524 = pneg %p289
        $region54: #{tpu_custom_call.1} parent=23 // pred_check_branch
          %526 = sbr.rel (%p524) target = $region56
        $region55: #{tpu_custom_call.1} parent=23 // pred_region
          %p527 = scmp.lt.s32.totalorder %s31, 1
          %s528 = scalar_select %p527, %s31, 1
          %s529 = scalar_lea.vmem %s9, %s528
        $region56: #{tpu_custom_call.1} parent=23 // pred_fallthru
          _
        // Predicated region
        $region57: #{tpu_custom_call.1} parent=23 // pred_check
          %p530 = pneg %p315
        $region58: #{tpu_custom_call.1} parent=23 // pred_check_branch
          %532 = sbr.rel (%p530) target = $region60
        $region59: #{tpu_custom_call.1} parent=23 // pred_region
          %p533 = scmp.lt.s32.totalorder %s31, 1
          %s534 = scalar_select %p533, %s31, 1
          %s535 = smul.addr %s534, 8
          %s536 = smul.addr %s535, 4
          %s537 = scalar_lea.vmem %s10, %s536
        $region60: #{tpu_custom_call.1} parent=23 // pred_fallthru
          _
        // Predicated region
        $region61: #{tpu_custom_call.1} parent=23 // pred_check
          %p538 = pneg %p341
        $region62: #{tpu_custom_call.1} parent=23 // pred_check_branch
          %540 = sbr.rel (%p538) target = $region64
        $region63: #{tpu_custom_call.1} parent=23 // pred_region
          %p541 = scmp.lt.s32.totalorder %s31, 1
          %s542 = scalar_select %p541, %s31, 1
          %s543 = scalar_lea.vmem %s11, %s542
        $region64: #{tpu_custom_call.1} parent=23 // pred_fallthru
          _
        // Predicated region
        $region65: #{tpu_custom_call.1} parent=23 // pred_check
          %p544 = pneg %p367
        $region66: #{tpu_custom_call.1} parent=23 // pred_check_branch
          %546 = sbr.rel (%p544) target = $region68
        $region67: #{tpu_custom_call.1} parent=23 // pred_region
          %p547 = scmp.lt.s32.totalorder %s31, 1
          %s548 = scalar_select %p547, %s31, 1
          %s549 = scalar_lea.vmem %s12, %s548
        $region68: #{tpu_custom_call.1} parent=23 // pred_fallthru
          _
        // Predicated region
        $region69: #{tpu_custom_call.1} parent=23 // pred_check
          %p550 = pneg %p393
        $region70: #{tpu_custom_call.1} parent=23 // pred_check_branch
          %552 = sbr.rel (%p550) target = $region72
        $region71: #{tpu_custom_call.1} parent=23 // pred_region
          %p553 = scmp.lt.s32.totalorder %s31, 1
          %s554 = scalar_select %p553, %s31, 1
          %s555 = scalar_lea.vmem %s13, %s554
        $region72: #{tpu_custom_call.1} parent=23 // pred_fallthru
          _
      $region24: #{tpu_custom_call.1} parent=5 // pred_fallthru
        _
      %p556 = scmp.le.s32.totalorder 1, %s23
      %p557 = scmp.lt.s32.totalorder %s23, 3
      %p558 = pnand %p556, %p557
      %p559 = pneg %p558
      // Predicated region
      $region73: #{tpu_custom_call.1} parent=5 // pred_check
        _
      $region74: #{tpu_custom_call.1} parent=5 // pred_check_branch
        %561 = sbr.rel (%p558) target = $region76
      $region75: #{tpu_custom_call.1} parent=5 // pred_region
        %s562 = ssub.s32 %s23, 1
        // Predicated region
        $region77: #{tpu_custom_call.1} parent=75 // pred_check
          %p563 = pneg %p61
        $region78: #{tpu_custom_call.1} parent=75 // pred_check_branch
          %565 = sbr.rel (%p563) target = $region80
        $region79: #{tpu_custom_call.1} parent=75 // pred_region
          %566 = dma.done [#allocation3], 256
        $region80: #{tpu_custom_call.1} parent=75 // pred_fallthru
          _
        // Predicated region
        $region81: #{tpu_custom_call.1} parent=75 // pred_check
          %p567 = pneg %p87
        $region82: #{tpu_custom_call.1} parent=75 // pred_check_branch
          %569 = sbr.rel (%p567) target = $region84
        $region83: #{tpu_custom_call.1} parent=75 // pred_region
          %570 = dma.done [#allocation6], 32
        $region84: #{tpu_custom_call.1} parent=75 // pred_fallthru
          _
        %p571 = pneg %p61
        %p572 = pneg %p58
        %p573 = pneg %p87
        %p574 = pneg %p84
        %p575 = scmp.lt.s32.totalorder %s33, 1
        %s576 = scalar_select %p575, %s33, 1
        %s577 = smul.addr %s576, 4
        %s578 = smul.addr %s577, 4
        %s579 = scalar_lea.vmem %s2, %s578
        %p580 = pneg %p113
        %p581 = pneg %p110
        %p582 = scmp.lt.s32.totalorder %s33, 1
        %s583 = scalar_select %p582, %s33, 1
        %s584 = scalar_lea.vmem %s3, %s583
        %p585 = pneg %p139
        %p586 = pneg %p136
        %p587 = scmp.lt.s32.totalorder %s33, 1
        %s588 = scalar_select %p587, %s33, 1
        %s589 = smul.addr %s588, 4
        %s590 = smul.addr %s589, 4
        %s591 = scalar_lea.vmem %s4, %s590
        %p592 = pneg %p165
        %p593 = pneg %p162
        %p594 = scmp.lt.s32.totalorder %s33, 1
        %s595 = scalar_select %p594, %s33, 1
        %s596 = scalar_lea.vmem %s5, %s595
        %p597 = pneg %p191
        %p598 = pneg %p188
        %p599 = scmp.lt.s32.totalorder %s33, 1
        %s600 = scalar_select %p599, %s33, 1
        %s601 = scalar_lea.vmem %s6, %s600
        %p602 = pneg %p217
        %p603 = pneg %p214
        %p604 = scmp.lt.s32.totalorder %s33, 1
        %s605 = scalar_select %p604, %s33, 1
        %s606 = scalar_lea.vmem %s7, %s605
        %p607 = pneg %p243
        %p608 = pneg %p240
        %p609 = scmp.lt.s32.totalorder %s33, 1
        %s610 = scalar_select %p609, %s33, 1
        %s611 = smul.addr %s610, 4
        %s612 = smul.addr %s611, 4
        %s613 = scalar_lea.vmem %s8, %s612
        %p614 = pneg %p269
        %p615 = pneg %p266
        %p616 = scmp.lt.s32.totalorder %s33, 1
        %s617 = scalar_select %p616, %s33, 1
        %s618 = scalar_lea.vmem %s9, %s617
        %p619 = pneg %p295
        %p620 = pneg %p292
        %p621 = scmp.lt.s32.totalorder %s33, 1
        %s622 = scalar_select %p621, %s33, 1
        %s623 = smul.addr %s622, 8
        %s624 = smul.addr %s623, 4
        %s625 = scalar_lea.vmem %s10, %s624
        %p626 = pneg %p321
        %p627 = pneg %p318
        %p628 = scmp.lt.s32.totalorder %s33, 1
        %s629 = scalar_select %p628, %s33, 1
        %s630 = scalar_lea.vmem %s11, %s629
        %p631 = pneg %p347
        %p632 = pneg %p344
        %p633 = scmp.lt.s32.totalorder %s33, 1
        %s634 = scalar_select %p633, %s33, 1
        %s635 = scalar_lea.vmem %s12, %s634
        %p636 = pneg %p373
        %p637 = pneg %p370
        %p638 = scmp.lt.s32.totalorder %s33, 1
        %s639 = scalar_select %p638, %s33, 1
        %s640 = scalar_lea.vmem %s13, %s639
        %p641 = pneg %p399
        %p642 = pneg %p396
        %p643 = pneg %p425
        %p644 = pneg %p422
        %s645 = smul.u32 2, %s32
        %s646 = smul.u32 2, %s32
        %p647 = scmp.lt.s32.totalorder %s33, 1
        %s648 = scalar_select %p647, %s33, 1
        %s649 = smul.addr %s648, 4
        %s650 = smul.addr %s649, 4
        %s651 = scalar_lea.vmem %s2, %s650
        %p652 = scmp.lt.s32.totalorder %s33, 1
        %s653 = scalar_select %p652, %s33, 1
        %s654 = scalar_lea.vmem %s3, %s653
        %p655 = scmp.lt.s32.totalorder %s33, 1
        %s656 = scalar_select %p655, %s33, 1
        %s657 = smul.addr %s656, 4
        %s658 = smul.addr %s657, 4
        %s659 = scalar_lea.vmem %s4, %s658
        %p660 = scmp.lt.s32.totalorder %s33, 1
        %s661 = scalar_select %p660, %s33, 1
        %s662 = scalar_lea.vmem %s5, %s661
        %p663 = scmp.lt.s32.totalorder %s33, 1
        %s664 = scalar_select %p663, %s33, 1
        %s665 = scalar_lea.vmem %s6, %s664
        %p666 = scmp.lt.s32.totalorder %s33, 1
        %s667 = scalar_select %p666, %s33, 1
        %s668 = scalar_lea.vmem %s7, %s667
        %p669 = scmp.lt.s32.totalorder %s33, 1
        %s670 = scalar_select %p669, %s33, 1
        %s671 = smul.addr %s670, 4
        %s672 = smul.addr %s671, 4
        %s673 = scalar_lea.vmem %s8, %s672
        %p674 = scmp.lt.s32.totalorder %s33, 1
        %s675 = scalar_select %p674, %s33, 1
        %s676 = scalar_lea.vmem %s9, %s675
        %p677 = scmp.lt.s32.totalorder %s33, 1
        %s678 = scalar_select %p677, %s33, 1
        %s679 = smul.addr %s678, 8
        %s680 = smul.addr %s679, 4
        %s681 = scalar_lea.vmem %s10, %s680
        %p682 = scmp.lt.s32.totalorder %s33, 1
        %s683 = scalar_select %p682, %s33, 1
        %s684 = scalar_lea.vmem %s11, %s683
        %p685 = scmp.lt.s32.totalorder %s33, 1
        %s686 = scalar_select %p685, %s33, 1
        %s687 = scalar_lea.vmem %s12, %s686
        %p688 = scmp.lt.s32.totalorder %s33, 1
        %s689 = scalar_select %p688, %s33, 1
        %s690 = scalar_lea.vmem %s13, %s689
        %s691 = smul.u32 2, %s32
        %p693 = scmp.eq.s32.totalorder %s33, 0
        // Predicated region
        $region85: #{tpu_custom_call.1} parent=75 // pred_check
          %p694 = pneg %p693
        $region86: #{tpu_custom_call.1} parent=75 // pred_check_branch
          %696 = sbr.rel (%p694) target = $region88
        $region87: #{tpu_custom_call.1} parent=75 // pred_region
          %v697 = vld [vmem:[#allocation2] sm:$0xff]
          %v698 = vld [vmem:[#allocation2 + $0x8] sm:$0xff]
          %vm699 = vcmask 261120
          %700 = vst.msk [vmem:[#allocation7] sm:$0xff] %vm699, %v697
          %701 = vst.msk [vmem:[#allocation7 + $0x8] sm:$0xff] %vm699, %v698
        $region88: #{tpu_custom_call.1} parent=75 // pred_fallthru
          _
        %v702 = vld [vmem:[#allocation7] sm:$0xff]
        %v703 = vld [vmem:[#allocation7 + $0x8] sm:$0xff]
        %v704 = vpack.c.bf16 %v703, %v702
        %v705 = vld [vmem:[%s651] sm:$0xf]
        %v706 = vld [vmem:[%s651 + $0x4] sm:$0xf]
        %v707 = vld [vmem:[%s651 + $0x8] sm:$0xf]
        %v708 = vld [vmem:[%s651 + $0xc] sm:$0xf]
        %v709 = vld [vmem:[%s654] sm:$0x1]
        %v711 = vlaneseq
        %v712 = vshrl.u32 %v711, 7
        %v713 = vsub.s32 0, %v712
        %v714 = vrot.slane %v709, %v713
        %v720 = vunpack.c.l.b16 %v705
        %v721 = vunpack.c.l.b16 %v706
        %v722 = vunpack.c.l.b16 %v707
        %v723 = vunpack.c.l.b16 %v708
        %v724 = vpack.c.b16 %v721, %v720
        %v725 = vpack.c.b16 %v723, %v722
        %vm728 = vcmask 261120
        %v730 = vsel %vm728, %v704, 0
        %732 = vmatprep.subr.bf16.mxu0 0
        %733 = vmatpush1.bf16.msra.mxu0 0
        %734 = vmatprep.subr.bf16.mxu0 0
        %735 = vmatpush1.bf16.msra.mxu0 0
        %736 = vmatprep.subr.bf16.mxu0 0
        %737 = vmatpush1.bf16.msra.mxu0 0
        %738 = vmatprep.subr.bf16.mxu0 0
        %739 = vmatpush1.bf16.msra.mxu0 0
        %740 = vmatprep.subr.bf16.mxu0 0
        %741 = vmatpush1.bf16.msra.mxu0 0
        %742 = vmatprep.subr.bf16.mxu0 0
        %743 = vmatpush1.bf16.msra.mxu0 0
        %744 = vmatprep.subr.bf16.mxu0 0
        %745 = vmatpush1.bf16.msra.mxu0 %v725
        %746 = vmatprep.subr.bf16.mxu0 0
        %747 = vmatpush1.bf16.msra.mxu0 %v724
        %748 = vmatprep.subr.bf16.mxu0 0
        %749 = vmatpush2.bf16.msra.mxu0 0
        %750 = vmatprep.subr.bf16.mxu0 0
        %751 = vmatpush2.bf16.msra.mxu0 0
        %752 = vmatprep.subr.bf16.mxu0 0
        %753 = vmatpush2.bf16.msra.mxu0 0
        %754 = vmatprep.subr.bf16.mxu0 0
        %755 = vmatpush2.bf16.msra.mxu0 0
        %756 = vmatprep.subr.bf16.mxu0 0
        %757 = vmatpush2.bf16.msra.mxu0 0
        %758 = vmatprep.subr.bf16.mxu0 0
        %759 = vmatpush2.bf16.msra.mxu0 0
        %760 = vmatprep.subr.bf16.mxu0 0
        %761 = vmatpush2.bf16.msra.mxu0 0
        %762 = vmatprep.subr.bf16.mxu0 0
        %763 = vmatpush2.bf16.msra.mxu0 0
        %764 = vmatprep.mubr.bf16.mxu0 0
        %765 = vmatmul.mubr.bf16.gmra.mxu0 %v730
        %v766 = vpop.f32.mrf.mxu0
        %v767 = vadd.f32 %v714, %v766
        %v768 = vpop.f32.mrf.mxu0
        %v769 = vpop.f32.mrf.mxu0
        %v770 = vadd.f32 %v714, %v769
        %v771 = vpop.f32.mrf.mxu0
        %772 = vdwg.mxu0
        %v773 = vld [vmem:[#allocation5] sm:$0x1]
        %v774 = vld [vmem:[#allocation5 + $0x1] sm:$0x1]
        %v775 = vsub.f32 %v773, 1.0
        %v776 = vsub.f32 %v774, 1.0
        %v777 = vmul.f32 %v775, 1e+10
        %v778 = vmul.f32 %v776, 1e+10
        %v781 = vlaneseq
        %v782 = vshrl.u32 %v781, 7
        %v783 = vsub.s32 0, %v782
        %v784 = vrot.slane %v777, %v783
        %v785 = vlaneseq
        %v786 = vshrl.u32 %v785, 7
        %v787 = vsub.s32 0, %v786
        %v788 = vrot.slane %v778, %v787
        %v791 = vpack.c.bf16 %v767, %v767
        %v792 = vpack.c.bf16 %v770, %v770
        %794 = vrot.lane.b32.xlu0 %v791, 96
        %v795 = vpop.permute.xlu0 %794
        %vm796 = vcmask 64512
        %v798 = vsel %vm796, %v791, 0
        %v801 = vsel %vm796, %v795, 0
        %803 = vmatprep.subr.bf16.mxu0 0
        %804 = vmatpush1.bf16.xpose.msra.mxu0 0
        %805 = vmatprep.subr.bf16.mxu0 0
        %806 = vmatpush1.bf16.xpose.msra.mxu0 0
        %807 = vmatprep.subr.bf16.mxu0 0
        %808 = vmatpush1.bf16.xpose.msra.mxu0 0
        %809 = vmatprep.subr.bf16.mxu0 0
        %810 = vmatpush1.bf16.xpose.msra.mxu0 0
        %811 = vmatprep.subr.bf16.mxu0 0
        %812 = vmatpush1.bf16.xpose.msra.mxu0 0
        %813 = vmatprep.subr.bf16.mxu0 0
        %814 = vmatpush1.bf16.xpose.msra.mxu0 0
        %815 = vmatprep.subr.bf16.mxu0 0
        %816 = vmatpush1.bf16.xpose.msra.mxu0 0
        %817 = vmatprep.subr.bf16.mxu0 0
        %818 = vmatpush1.bf16.xpose.msra.mxu0 %v801
        %819 = vmatprep.subr.bf16.mxu0 0
        %820 = vmatpush2.bf16.xpose.msra.mxu0 0
        %821 = vmatprep.subr.bf16.mxu0 0
        %822 = vmatpush2.bf16.xpose.msra.mxu0 0
        %823 = vmatprep.subr.bf16.mxu0 0
        %824 = vmatpush2.bf16.xpose.msra.mxu0 0
        %825 = vmatprep.subr.bf16.mxu0 0
        %826 = vmatpush2.bf16.xpose.msra.mxu0 0
        %827 = vmatprep.subr.bf16.mxu0 0
        %828 = vmatpush2.bf16.xpose.msra.mxu0 0
        %829 = vmatprep.subr.bf16.mxu0 0
        %830 = vmatpush2.bf16.xpose.msra.mxu0 0
        %831 = vmatprep.subr.bf16.mxu0 0
        %832 = vmatpush2.bf16.xpose.msra.mxu0 0
        %833 = vmatprep.subr.bf16.mxu0 0
        %834 = vmatpush2.bf16.xpose.msra.mxu0 0
        %835 = vmatprep.mubr.bf16.mxu0 0
        %836 = vmatmul.mubr.bf16.gmra.mxu0 %v798
        %v837 = vpop.f32.mrf.mxu0
        %v838 = vadd.f32 0.0, %v837
        %v839 = vpop.f32.mrf.mxu0
        %v840 = vpop.f32.mrf.mxu0
        %v841 = vpop.f32.mrf.mxu0
        %842 = vdwg.mxu0
        %844 = vrot.lane.b32.xlu0 %v792, 96
        %v845 = vpop.permute.xlu0 %844
        %v847 = vsel %vm796, %v792, 0
        %v850 = vsel %vm796, %v845, 0
        %852 = vmatprep.subr.bf16.mxu0 0
        %853 = vmatpush1.bf16.xpose.msra.mxu0 0
        %854 = vmatprep.subr.bf16.mxu0 0
        %855 = vmatpush1.bf16.xpose.msra.mxu0 0
        %856 = vmatprep.subr.bf16.mxu0 0
        %857 = vmatpush1.bf16.xpose.msra.mxu0 0
        %858 = vmatprep.subr.bf16.mxu0 0
        %859 = vmatpush1.bf16.xpose.msra.mxu0 0
        %860 = vmatprep.subr.bf16.mxu0 0
        %861 = vmatpush1.bf16.xpose.msra.mxu0 0
        %862 = vmatprep.subr.bf16.mxu0 0
        %863 = vmatpush1.bf16.xpose.msra.mxu0 0
        %864 = vmatprep.subr.bf16.mxu0 0
        %865 = vmatpush1.bf16.xpose.msra.mxu0 0
        %866 = vmatprep.subr.bf16.mxu0 0
        %867 = vmatpush1.bf16.xpose.msra.mxu0 %v850
        %868 = vmatprep.subr.bf16.mxu0 0
        %869 = vmatpush2.bf16.xpose.msra.mxu0 0
        %870 = vmatprep.subr.bf16.mxu0 0
        %871 = vmatpush2.bf16.xpose.msra.mxu0 0
        %872 = vmatprep.subr.bf16.mxu0 0
        %873 = vmatpush2.bf16.xpose.msra.mxu0 0
        %874 = vmatprep.subr.bf16.mxu0 0
        %875 = vmatpush2.bf16.xpose.msra.mxu0 0
        %876 = vmatprep.subr.bf16.mxu0 0
        %877 = vmatpush2.bf16.xpose.msra.mxu0 0
        %878 = vmatprep.subr.bf16.mxu0 0
        %879 = vmatpush2.bf16.xpose.msra.mxu0 0
        %880 = vmatprep.subr.bf16.mxu0 0
        %881 = vmatpush2.bf16.xpose.msra.mxu0 0
        %882 = vmatprep.subr.bf16.mxu0 0
        %883 = vmatpush2.bf16.xpose.msra.mxu0 0
        %884 = vmatprep.mubr.bf16.mxu0 0
        %885 = vmatmul.mubr.bf16.gmra.mxu0 %v847
        %v886 = vpop.f32.mrf.mxu0
        %v887 = vadd.f32 0.0, %v886
        %v888 = vpop.f32.mrf.mxu0
        %v889 = vpop.f32.mrf.mxu0
        %v890 = vpop.f32.mrf.mxu0
        %891 = vdwg.mxu0
        %v892 = vmul.f32 %v838, 0.35355338
        %v893 = vmul.f32 %v887, 0.35355338
        %v894 = vadd.f32 %v892, %v784
        %v895 = vadd.f32 %v893, %v788
        %v896 = vsel %vm796, %v894, -inf
        %897 = vmax.xlane.f32.xlu0 %v896
        %v898 = vpop.xlane.xlu0 %897
        %v899 = vsel %vm796, %v895, -inf
        %900 = vmax.xlane.f32.xlu0 %v899
        %v901 = vpop.xlane.xlu0 %900
        %v902 = vsub.f32 %v894, %v898
        %v903 = vsub.f32 %v895, %v901
        %v904 = vmul.f32 %v902, 1.442695
        %v905 = vpow.pop %v904
        %v906 = vmul.f32 %v903, 1.442695
        %v907 = vpow.pop %v906
        %v908 = vsel %vm796, %v905, 0.0
        %909 = vadd.xlane.f32.xlu0 %v908
        %v910 = vpop.xlane.xlu0 %909
        %v911 = vsel %vm796, %v907, 0.0
        %912 = vadd.xlane.f32.xlu0 %v911
        %v913 = vpop.xlane.xlu0 %912
        %v914 = vrcp.pop %v910
        %v915 = vrcp.pop %v913
        %v916 = vmul.f32 %v905, %v914
        %v917 = vmul.f32 %v907, %v915
        %v918 = vpack.c.bf16 %v916, %v916
        %v919 = vpack.c.bf16 %v917, %v917
        %920 = vrot.lane.b32.xlu0 %v791, 64
        %v921 = vpop.permute.xlu0 %920
        %v923 = vsel %vm796, %v918, 0
        %vm925 = vcmask 1043456
        %v927 = vsel %vm925, %v921, 0
        %929 = vmatprep.subr.bf16.mxu0 0
        %930 = vmatpush1.bf16.msra.mxu0 0
        %931 = vmatprep.subr.bf16.mxu0 0
        %932 = vmatpush1.bf16.msra.mxu0 0
        %933 = vmatprep.subr.bf16.mxu0 0
        %934 = vmatpush1.bf16.msra.mxu0 0
        %935 = vmatprep.subr.bf16.mxu0 0
        %936 = vmatpush1.bf16.msra.mxu0 0
        %937 = vmatprep.subr.bf16.mxu0 0
        %938 = vmatpush1.bf16.msra.mxu0 0
        %939 = vmatprep.subr.bf16.mxu0 0
        %940 = vmatpush1.bf16.msra.mxu0 0
        %941 = vmatprep.subr.bf16.mxu0 0
        %942 = vmatpush1.bf16.msra.mxu0 0
        %943 = vmatprep.subr.bf16.mxu0 0
        %944 = vmatpush1.bf16.msra.mxu0 %v927
        %945 = vmatprep.subr.bf16.mxu0 0
        %946 = vmatpush2.bf16.msra.mxu0 0
        %947 = vmatprep.subr.bf16.mxu0 0
        %948 = vmatpush2.bf16.msra.mxu0 0
        %949 = vmatprep.subr.bf16.mxu0 0
        %950 = vmatpush2.bf16.msra.mxu0 0
        %951 = vmatprep.subr.bf16.mxu0 0
        %952 = vmatpush2.bf16.msra.mxu0 0
        %953 = vmatprep.subr.bf16.mxu0 0
        %954 = vmatpush2.bf16.msra.mxu0 0
        %955 = vmatprep.subr.bf16.mxu0 0
        %956 = vmatpush2.bf16.msra.mxu0 0
        %957 = vmatprep.subr.bf16.mxu0 0
        %958 = vmatpush2.bf16.msra.mxu0 0
        %959 = vmatprep.subr.bf16.mxu0 0
        %960 = vmatpush2.bf16.msra.mxu0 0
        %961 = vmatprep.mubr.bf16.mxu0 0
        %962 = vmatmul.mubr.bf16.gmra.mxu0 %v923
        %v963 = vpop.f32.mrf.mxu0
        %v964 = vadd.f32 0.0, %v963
        %v965 = vpop.f32.mrf.mxu0
        %v966 = vpop.f32.mrf.mxu0
        %v967 = vpop.f32.mrf.mxu0
        %968 = vdwg.mxu0
        %969 = vrot.lane.b32.xlu0 %v792, 64
        %v970 = vpop.permute.xlu0 %969
        %v972 = vsel %vm796, %v919, 0
        %v975 = vsel %vm925, %v970, 0
        %977 = vmatprep.subr.bf16.mxu0 0
        %978 = vmatpush1.bf16.msra.mxu0 0
        %979 = vmatprep.subr.bf16.mxu0 0
        %980 = vmatpush1.bf16.msra.mxu0 0
        %981 = vmatprep.subr.bf16.mxu0 0
        %982 = vmatpush1.bf16.msra.mxu0 0
        %983 = vmatprep.subr.bf16.mxu0 0
        %984 = vmatpush1.bf16.msra.mxu0 0
        %985 = vmatprep.subr.bf16.mxu0 0
        %986 = vmatpush1.bf16.msra.mxu0 0
        %987 = vmatprep.subr.bf16.mxu0 0
        %988 = vmatpush1.bf16.msra.mxu0 0
        %989 = vmatprep.subr.bf16.mxu0 0
        %990 = vmatpush1.bf16.msra.mxu0 0
        %991 = vmatprep.subr.bf16.mxu0 0
        %992 = vmatpush1.bf16.msra.mxu0 %v975
        %993 = vmatprep.subr.bf16.mxu0 0
        %994 = vmatpush2.bf16.msra.mxu0 0
        %995 = vmatprep.subr.bf16.mxu0 0
        %996 = vmatpush2.bf16.msra.mxu0 0
        %997 = vmatprep.subr.bf16.mxu0 0
        %998 = vmatpush2.bf16.msra.mxu0 0
        %999 = vmatprep.subr.bf16.mxu0 0
        %1000 = vmatpush2.bf16.msra.mxu0 0
        %1001 = vmatprep.subr.bf16.mxu0 0
        %1002 = vmatpush2.bf16.msra.mxu0 0
        %1003 = vmatprep.subr.bf16.mxu0 0
        %1004 = vmatpush2.bf16.msra.mxu0 0
        %1005 = vmatprep.subr.bf16.mxu0 0
        %1006 = vmatpush2.bf16.msra.mxu0 0
        %1007 = vmatprep.subr.bf16.mxu0 0
        %1008 = vmatpush2.bf16.msra.mxu0 0
        %1009 = vmatprep.mubr.bf16.mxu0 0
        %1010 = vmatmul.mubr.bf16.gmra.mxu0 %v972
        %v1011 = vpop.f32.mrf.mxu0
        %v1012 = vadd.f32 0.0, %v1011
        %v1013 = vpop.f32.mrf.mxu0
        %v1014 = vpop.f32.mrf.mxu0
        %v1015 = vpop.f32.mrf.mxu0
        %1016 = vdwg.mxu0
        %1017 = vrot.lane.b32.xlu0 %v791, 120
        %v1018 = vpop.permute.xlu0 %1017
        %1019 = vrot.lane.b32.xlu0 %v791, 88
        %v1020 = vpop.permute.xlu0 %1019
        %v1022 = vsel %vm796, %v1018, 0
        %v1025 = vsel %vm796, %v1020, 0
        %1027 = vmatprep.subr.bf16.mxu0 0
        %1028 = vmatpush1.bf16.xpose.msra.mxu0 0
        %1029 = vmatprep.subr.bf16.mxu0 0
        %1030 = vmatpush1.bf16.xpose.msra.mxu0 0
        %1031 = vmatprep.subr.bf16.mxu0 0
        %1032 = vmatpush1.bf16.xpose.msra.mxu0 0
        %1033 = vmatprep.subr.bf16.mxu0 0
        %1034 = vmatpush1.bf16.xpose.msra.mxu0 0
        %1035 = vmatprep.subr.bf16.mxu0 0
        %1036 = vmatpush1.bf16.xpose.msra.mxu0 0
        %1037 = vmatprep.subr.bf16.mxu0 0
        %1038 = vmatpush1.bf16.xpose.msra.mxu0 0
        %1039 = vmatprep.subr.bf16.mxu0 0
        %1040 = vmatpush1.bf16.xpose.msra.mxu0 0
        %1041 = vmatprep.subr.bf16.mxu0 0
        %1042 = vmatpush1.bf16.xpose.msra.mxu0 %v1025
        %1043 = vmatprep.subr.bf16.mxu0 0
        %1044 = vmatpush2.bf16.xpose.msra.mxu0 0
        %1045 = vmatprep.subr.bf16.mxu0 0
        %1046 = vmatpush2.bf16.xpose.msra.mxu0 0
        %1047 = vmatprep.subr.bf16.mxu0 0
        %1048 = vmatpush2.bf16.xpose.msra.mxu0 0
        %1049 = vmatprep.subr.bf16.mxu0 0
        %1050 = vmatpush2.bf16.xpose.msra.mxu0 0
        %1051 = vmatprep.subr.bf16.mxu0 0
        %1052 = vmatpush2.bf16.xpose.msra.mxu0 0
        %1053 = vmatprep.subr.bf16.mxu0 0
        %1054 = vmatpush2.bf16.xpose.msra.mxu0 0
        %1055 = vmatprep.subr.bf16.mxu0 0
        %1056 = vmatpush2.bf16.xpose.msra.mxu0 0
        %1057 = vmatprep.subr.bf16.mxu0 0
        %1058 = vmatpush2.bf16.xpose.msra.mxu0 0
        %1059 = vmatprep.mubr.bf16.mxu0 0
        %1060 = vmatmul.mubr.bf16.gmra.mxu0 %v1022
        %v1061 = vpop.f32.mrf.mxu0
        %v1062 = vadd.f32 0.0, %v1061
        %v1063 = vpop.f32.mrf.mxu0
        %v1064 = vpop.f32.mrf.mxu0
        %v1065 = vpop.f32.mrf.mxu0
        %1066 = vdwg.mxu0
        %1067 = vrot.lane.b32.xlu0 %v792, 120
        %v1068 = vpop.permute.xlu0 %1067
        %1069 = vrot.lane.b32.xlu0 %v792, 88
        %v1070 = vpop.permute.xlu0 %1069
        %v1072 = vsel %vm796, %v1068, 0
        %v1075 = vsel %vm796, %v1070, 0
        %1077 = vmatprep.subr.bf16.mxu0 0
        %1078 = vmatpush1.bf16.xpose.msra.mxu0 0
        %1079 = vmatprep.subr.bf16.mxu0 0
        %1080 = vmatpush1.bf16.xpose.msra.mxu0 0
        %1081 = vmatprep.subr.bf16.mxu0 0
        %1082 = vmatpush1.bf16.xpose.msra.mxu0 0
        %1083 = vmatprep.subr.bf16.mxu0 0
        %1084 = vmatpush1.bf16.xpose.msra.mxu0 0
        %1085 = vmatprep.subr.bf16.mxu0 0
        %1086 = vmatpush1.bf16.xpose.msra.mxu0 0
        %1087 = vmatprep.subr.bf16.mxu0 0
        %1088 = vmatpush1.bf16.xpose.msra.mxu0 0
        %1089 = vmatprep.subr.bf16.mxu0 0
        %1090 = vmatpush1.bf16.xpose.msra.mxu0 0
        %1091 = vmatprep.subr.bf16.mxu0 0
        %1092 = vmatpush1.bf16.xpose.msra.mxu0 %v1075
        %1093 = vmatprep.subr.bf16.mxu0 0
        %1094 = vmatpush2.bf16.xpose.msra.mxu0 0
        %1095 = vmatprep.subr.bf16.mxu0 0
        %1096 = vmatpush2.bf16.xpose.msra.mxu0 0
        %1097 = vmatprep.subr.bf16.mxu0 0
        %1098 = vmatpush2.bf16.xpose.msra.mxu0 0
        %1099 = vmatprep.subr.bf16.mxu0 0
        %1100 = vmatpush2.bf16.xpose.msra.mxu0 0
        %1101 = vmatprep.subr.bf16.mxu0 0
        %1102 = vmatpush2.bf16.xpose.msra.mxu0 0
        %1103 = vmatprep.subr.bf16.mxu0 0
        %1104 = vmatpush2.bf16.xpose.msra.mxu0 0
        %1105 = vmatprep.subr.bf16.mxu0 0
        %1106 = vmatpush2.bf16.xpose.msra.mxu0 0
        %1107 = vmatprep.subr.bf16.mxu0 0
        %1108 = vmatpush2.bf16.xpose.msra.mxu0 0
        %1109 = vmatprep.mubr.bf16.mxu0 0
        %1110 = vmatmul.mubr.bf16.gmra.mxu0 %v1072
        %v1111 = vpop.f32.mrf.mxu0
        %v1112 = vadd.f32 0.0, %v1111
        %v1113 = vpop.f32.mrf.mxu0
        %v1114 = vpop.f32.mrf.mxu0
        %v1115 = vpop.f32.mrf.mxu0
        %1116 = vdwg.mxu0
        %v1117 = vmul.f32 %v1062, 0.35355338
        %v1118 = vmul.f32 %v1112, 0.35355338
        %v1119 = vadd.f32 %v1117, %v784
        %v1120 = vadd.f32 %v1118, %v788
        %v1121 = vsel %vm796, %v1119, -inf
        %1122 = vmax.xlane.f32.xlu0 %v1121
        %v1123 = vpop.xlane.xlu0 %1122
        %v1124 = vsel %vm796, %v1120, -inf
        %1125 = vmax.xlane.f32.xlu0 %v1124
        %v1126 = vpop.xlane.xlu0 %1125
        %v1127 = vsub.f32 %v1119, %v1123
        %v1128 = vsub.f32 %v1120, %v1126
        %v1129 = vmul.f32 %v1127, 1.442695
        %v1130 = vpow.pop %v1129
        %v1131 = vmul.f32 %v1128, 1.442695
        %v1132 = vpow.pop %v1131
        %v1133 = vsel %vm796, %v1130, 0.0
        %1134 = vadd.xlane.f32.xlu0 %v1133
        %v1135 = vpop.xlane.xlu0 %1134
        %v1136 = vsel %vm796, %v1132, 0.0
        %1137 = vadd.xlane.f32.xlu0 %v1136
        %v1138 = vpop.xlane.xlu0 %1137
        %v1139 = vrcp.pop %v1135
        %v1140 = vrcp.pop %v1138
        %v1141 = vmul.f32 %v1130, %v1139
        %v1142 = vmul.f32 %v1132, %v1140
        %v1143 = vpack.c.bf16 %v1141, %v1141
        %v1144 = vpack.c.bf16 %v1142, %v1142
        %1145 = vrot.lane.b32.xlu0 %v791, 56
        %v1146 = vpop.permute.xlu0 %1145
        %v1148 = vsel %vm796, %v1143, 0
        %v1151 = vsel %vm925, %v1146, 0
        %1153 = vmatprep.subr.bf16.mxu0 0
        %1154 = vmatpush1.bf16.msra.mxu0 0
        %1155 = vmatprep.subr.bf16.mxu0 0
        %1156 = vmatpush1.bf16.msra.mxu0 0
        %1157 = vmatprep.subr.bf16.mxu0 0
        %1158 = vmatpush1.bf16.msra.mxu0 0
        %1159 = vmatprep.subr.bf16.mxu0 0
        %1160 = vmatpush1.bf16.msra.mxu0 0
        %1161 = vmatprep.subr.bf16.mxu0 0
        %1162 = vmatpush1.bf16.msra.mxu0 0
        %1163 = vmatprep.subr.bf16.mxu0 0
        %1164 = vmatpush1.bf16.msra.mxu0 0
        %1165 = vmatprep.subr.bf16.mxu0 0
        %1166 = vmatpush1.bf16.msra.mxu0 0
        %1167 = vmatprep.subr.bf16.mxu0 0
        %1168 = vmatpush1.bf16.msra.mxu0 %v1151
        %1169 = vmatprep.subr.bf16.mxu0 0
        %1170 = vmatpush2.bf16.msra.mxu0 0
        %1171 = vmatprep.subr.bf16.mxu0 0
        %1172 = vmatpush2.bf16.msra.mxu0 0
        %1173 = vmatprep.subr.bf16.mxu0 0
        %1174 = vmatpush2.bf16.msra.mxu0 0
        %1175 = vmatprep.subr.bf16.mxu0 0
        %1176 = vmatpush2.bf16.msra.mxu0 0
        %1177 = vmatprep.subr.bf16.mxu0 0
        %1178 = vmatpush2.bf16.msra.mxu0 0
        %1179 = vmatprep.subr.bf16.mxu0 0
        %1180 = vmatpush2.bf16.msra.mxu0 0
        %1181 = vmatprep.subr.bf16.mxu0 0
        %1182 = vmatpush2.bf16.msra.mxu0 0
        %1183 = vmatprep.subr.bf16.mxu0 0
        %1184 = vmatpush2.bf16.msra.mxu0 0
        %1185 = vmatprep.mubr.bf16.mxu0 0
        %1186 = vmatmul.mubr.bf16.gmra.mxu0 %v1148
        %v1187 = vpop.f32.mrf.mxu0
        %v1188 = vadd.f32 0.0, %v1187
        %v1189 = vpop.f32.mrf.mxu0
        %v1190 = vpop.f32.mrf.mxu0
        %v1191 = vpop.f32.mrf.mxu0
        %1192 = vdwg.mxu0
        %1193 = vrot.lane.b32.xlu0 %v792, 56
        %v1194 = vpop.permute.xlu0 %1193
        %v1196 = vsel %vm796, %v1144, 0
        %v1199 = vsel %vm925, %v1194, 0
        %1201 = vmatprep.subr.bf16.mxu0 0
        %1202 = vmatpush1.bf16.msra.mxu0 0
        %1203 = vmatprep.subr.bf16.mxu0 0
        %1204 = vmatpush1.bf16.msra.mxu0 0
        %1205 = vmatprep.subr.bf16.mxu0 0
        %1206 = vmatpush1.bf16.msra.mxu0 0
        %1207 = vmatprep.subr.bf16.mxu0 0
        %1208 = vmatpush1.bf16.msra.mxu0 0
        %1209 = vmatprep.subr.bf16.mxu0 0
        %1210 = vmatpush1.bf16.msra.mxu0 0
        %1211 = vmatprep.subr.bf16.mxu0 0
        %1212 = vmatpush1.bf16.msra.mxu0 0
        %1213 = vmatprep.subr.bf16.mxu0 0
        %1214 = vmatpush1.bf16.msra.mxu0 0
        %1215 = vmatprep.subr.bf16.mxu0 0
        %1216 = vmatpush1.bf16.msra.mxu0 %v1199
        %1217 = vmatprep.subr.bf16.mxu0 0
        %1218 = vmatpush2.bf16.msra.mxu0 0
        %1219 = vmatprep.subr.bf16.mxu0 0
        %1220 = vmatpush2.bf16.msra.mxu0 0
        %1221 = vmatprep.subr.bf16.mxu0 0
        %1222 = vmatpush2.bf16.msra.mxu0 0
        %1223 = vmatprep.subr.bf16.mxu0 0
        %1224 = vmatpush2.bf16.msra.mxu0 0
        %1225 = vmatprep.subr.bf16.mxu0 0
        %1226 = vmatpush2.bf16.msra.mxu0 0
        %1227 = vmatprep.subr.bf16.mxu0 0
        %1228 = vmatpush2.bf16.msra.mxu0 0
        %1229 = vmatprep.subr.bf16.mxu0 0
        %1230 = vmatpush2.bf16.msra.mxu0 0
        %1231 = vmatprep.subr.bf16.mxu0 0
        %1232 = vmatpush2.bf16.msra.mxu0 0
        %1233 = vmatprep.mubr.bf16.mxu0 0
        %1234 = vmatmul.mubr.bf16.gmra.mxu0 %v1196
        %v1235 = vpop.f32.mrf.mxu0
        %v1236 = vadd.f32 0.0, %v1235
        %v1237 = vpop.f32.mrf.mxu0
        %v1238 = vpop.f32.mrf.mxu0
        %v1239 = vpop.f32.mrf.mxu0
        %1240 = vdwg.mxu0
        %1241 = vrot.lane.b32.xlu0 %v791, 112
        %v1242 = vpop.permute.xlu0 %1241
        %1243 = vrot.lane.b32.xlu0 %v791, 80
        %v1244 = vpop.permute.xlu0 %1243
        %v1246 = vsel %vm796, %v1242, 0
        %v1249 = vsel %vm796, %v1244, 0
        %1251 = vmatprep.subr.bf16.mxu0 0
        %1252 = vmatpush1.bf16.xpose.msra.mxu0 0
        %1253 = vmatprep.subr.bf16.mxu0 0
        %1254 = vmatpush1.bf16.xpose.msra.mxu0 0
        %1255 = vmatprep.subr.bf16.mxu0 0
        %1256 = vmatpush1.bf16.xpose.msra.mxu0 0
        %1257 = vmatprep.subr.bf16.mxu0 0
        %1258 = vmatpush1.bf16.xpose.msra.mxu0 0
        %1259 = vmatprep.subr.bf16.mxu0 0
        %1260 = vmatpush1.bf16.xpose.msra.mxu0 0
        %1261 = vmatprep.subr.bf16.mxu0 0
        %1262 = vmatpush1.bf16.xpose.msra.mxu0 0
        %1263 = vmatprep.subr.bf16.mxu0 0
        %1264 = vmatpush1.bf16.xpose.msra.mxu0 0
        %1265 = vmatprep.subr.bf16.mxu0 0
        %1266 = vmatpush1.bf16.xpose.msra.mxu0 %v1249
        %1267 = vmatprep.subr.bf16.mxu0 0
        %1268 = vmatpush2.bf16.xpose.msra.mxu0 0
        %1269 = vmatprep.subr.bf16.mxu0 0
        %1270 = vmatpush2.bf16.xpose.msra.mxu0 0
        %1271 = vmatprep.subr.bf16.mxu0 0
        %1272 = vmatpush2.bf16.xpose.msra.mxu0 0
        %1273 = vmatprep.subr.bf16.mxu0 0
        %1274 = vmatpush2.bf16.xpose.msra.mxu0 0
        %1275 = vmatprep.subr.bf16.mxu0 0
        %1276 = vmatpush2.bf16.xpose.msra.mxu0 0
        %1277 = vmatprep.subr.bf16.mxu0 0
        %1278 = vmatpush2.bf16.xpose.msra.mxu0 0
        %1279 = vmatprep.subr.bf16.mxu0 0
        %1280 = vmatpush2.bf16.xpose.msra.mxu0 0
        %1281 = vmatprep.subr.bf16.mxu0 0
        %1282 = vmatpush2.bf16.xpose.msra.mxu0 0
        %1283 = vmatprep.mubr.bf16.mxu0 0
        %1284 = vmatmul.mubr.bf16.gmra.mxu0 %v1246
        %v1285 = vpop.f32.mrf.mxu0
        %v1286 = vadd.f32 0.0, %v1285
        %v1287 = vpop.f32.mrf.mxu0
        %v1288 = vpop.f32.mrf.mxu0
        %v1289 = vpop.f32.mrf.mxu0
        %1290 = vdwg.mxu0
        %1291 = vrot.lane.b32.xlu0 %v792, 112
        %v1292 = vpop.permute.xlu0 %1291
        %1293 = vrot.lane.b32.xlu0 %v792, 80
        %v1294 = vpop.permute.xlu0 %1293
        %v1296 = vsel %vm796, %v1292, 0
        %v1299 = vsel %vm796, %v1294, 0
        %1301 = vmatprep.subr.bf16.mxu0 0
        %1302 = vmatpush1.bf16.xpose.msra.mxu0 0
        %1303 = vmatprep.subr.bf16.mxu0 0
        %1304 = vmatpush1.bf16.xpose.msra.mxu0 0
        %1305 = vmatprep.subr.bf16.mxu0 0
        %1306 = vmatpush1.bf16.xpose.msra.mxu0 0
        %1307 = vmatprep.subr.bf16.mxu0 0
        %1308 = vmatpush1.bf16.xpose.msra.mxu0 0
        %1309 = vmatprep.subr.bf16.mxu0 0
        %1310 = vmatpush1.bf16.xpose.msra.mxu0 0
        %1311 = vmatprep.subr.bf16.mxu0 0
        %1312 = vmatpush1.bf16.xpose.msra.mxu0 0
        %1313 = vmatprep.subr.bf16.mxu0 0
        %1314 = vmatpush1.bf16.xpose.msra.mxu0 0
        %1315 = vmatprep.subr.bf16.mxu0 0
        %1316 = vmatpush1.bf16.xpose.msra.mxu0 %v1299
        %1317 = vmatprep.subr.bf16.mxu0 0
        %1318 = vmatpush2.bf16.xpose.msra.mxu0 0
        %1319 = vmatprep.subr.bf16.mxu0 0
        %1320 = vmatpush2.bf16.xpose.msra.mxu0 0
        %1321 = vmatprep.subr.bf16.mxu0 0
        %1322 = vmatpush2.bf16.xpose.msra.mxu0 0
        %1323 = vmatprep.subr.bf16.mxu0 0
        %1324 = vmatpush2.bf16.xpose.msra.mxu0 0
        %1325 = vmatprep.subr.bf16.mxu0 0
        %1326 = vmatpush2.bf16.xpose.msra.mxu0 0
        %1327 = vmatprep.subr.bf16.mxu0 0
        %1328 = vmatpush2.bf16.xpose.msra.mxu0 0
        %1329 = vmatprep.subr.bf16.mxu0 0
        %1330 = vmatpush2.bf16.xpose.msra.mxu0 0
        %1331 = vmatprep.subr.bf16.mxu0 0
        %1332 = vmatpush2.bf16.xpose.msra.mxu0 0
        %1333 = vmatprep.mubr.bf16.mxu0 0
        %1334 = vmatmul.mubr.bf16.gmra.mxu0 %v1296
        %v1335 = vpop.f32.mrf.mxu0
        %v1336 = vadd.f32 0.0, %v1335
        %v1337 = vpop.f32.mrf.mxu0
        %v1338 = vpop.f32.mrf.mxu0
        %v1339 = vpop.f32.mrf.mxu0
        %1340 = vdwg.mxu0
        %v1341 = vmul.f32 %v1286, 0.35355338
        %v1342 = vmul.f32 %v1336, 0.35355338
        %v1343 = vadd.f32 %v1341, %v784
        %v1344 = vadd.f32 %v1342, %v788
        %v1345 = vsel %vm796, %v1343, -inf
        %1346 = vmax.xlane.f32.xlu0 %v1345
        %v1347 = vpop.xlane.xlu0 %1346
        %v1348 = vsel %vm796, %v1344, -inf
        %1349 = vmax.xlane.f32.xlu0 %v1348
        %v1350 = vpop.xlane.xlu0 %1349
        %v1351 = vsub.f32 %v1343, %v1347
        %v1352 = vsub.f32 %v1344, %v1350
        %v1353 = vmul.f32 %v1351, 1.442695
        %v1354 = vpow.pop %v1353
        %v1355 = vmul.f32 %v1352, 1.442695
        %v1356 = vpow.pop %v1355
        %v1357 = vsel %vm796, %v1354, 0.0
        %1358 = vadd.xlane.f32.xlu0 %v1357
        %v1359 = vpop.xlane.xlu0 %1358
        %v1360 = vsel %vm796, %v1356, 0.0
        %1361 = vadd.xlane.f32.xlu0 %v1360
        %v1362 = vpop.xlane.xlu0 %1361
        %v1363 = vrcp.pop %v1359
        %v1364 = vrcp.pop %v1362
        %v1365 = vmul.f32 %v1354, %v1363
        %v1366 = vmul.f32 %v1356, %v1364
        %v1367 = vpack.c.bf16 %v1365, %v1365
        %v1368 = vpack.c.bf16 %v1366, %v1366
        %1369 = vrot.lane.b32.xlu0 %v791, 48
        %v1370 = vpop.permute.xlu0 %1369
        %v1372 = vsel %vm796, %v1367, 0
        %v1375 = vsel %vm925, %v1370, 0
        %1377 = vmatprep.subr.bf16.mxu0 0
        %1378 = vmatpush1.bf16.msra.mxu0 0
        %1379 = vmatprep.subr.bf16.mxu0 0
        %1380 = vmatpush1.bf16.msra.mxu0 0
        %1381 = vmatprep.subr.bf16.mxu0 0
        %1382 = vmatpush1.bf16.msra.mxu0 0
        %1383 = vmatprep.subr.bf16.mxu0 0
        %1384 = vmatpush1.bf16.msra.mxu0 0
        %1385 = vmatprep.subr.bf16.mxu0 0
        %1386 = vmatpush1.bf16.msra.mxu0 0
        %1387 = vmatprep.subr.bf16.mxu0 0
        %1388 = vmatpush1.bf16.msra.mxu0 0
        %1389 = vmatprep.subr.bf16.mxu0 0
        %1390 = vmatpush1.bf16.msra.mxu0 0
        %1391 = vmatprep.subr.bf16.mxu0 0
        %1392 = vmatpush1.bf16.msra.mxu0 %v1375
        %1393 = vmatprep.subr.bf16.mxu0 0
        %1394 = vmatpush2.bf16.msra.mxu0 0
        %1395 = vmatprep.subr.bf16.mxu0 0
        %1396 = vmatpush2.bf16.msra.mxu0 0
        %1397 = vmatprep.subr.bf16.mxu0 0
        %1398 = vmatpush2.bf16.msra.mxu0 0
        %1399 = vmatprep.subr.bf16.mxu0 0
        %1400 = vmatpush2.bf16.msra.mxu0 0
        %1401 = vmatprep.subr.bf16.mxu0 0
        %1402 = vmatpush2.bf16.msra.mxu0 0
        %1403 = vmatprep.subr.bf16.mxu0 0
        %1404 = vmatpush2.bf16.msra.mxu0 0
        %1405 = vmatprep.subr.bf16.mxu0 0
        %1406 = vmatpush2.bf16.msra.mxu0 0
        %1407 = vmatprep.subr.bf16.mxu0 0
        %1408 = vmatpush2.bf16.msra.mxu0 0
        %1409 = vmatprep.mubr.bf16.mxu0 0
        %1410 = vmatmul.mubr.bf16.gmra.mxu0 %v1372
        %v1411 = vpop.f32.mrf.mxu0
        %v1412 = vadd.f32 0.0, %v1411
        %v1413 = vpop.f32.mrf.mxu0
        %v1414 = vpop.f32.mrf.mxu0
        %v1415 = vpop.f32.mrf.mxu0
        %1416 = vdwg.mxu0
        %1417 = vrot.lane.b32.xlu0 %v792, 48
        %v1418 = vpop.permute.xlu0 %1417
        %v1420 = vsel %vm796, %v1368, 0
        %v1423 = vsel %vm925, %v1418, 0
        %1425 = vmatprep.subr.bf16.mxu0 0
        %1426 = vmatpush1.bf16.msra.mxu0 0
        %1427 = vmatprep.subr.bf16.mxu0 0
        %1428 = vmatpush1.bf16.msra.mxu0 0
        %1429 = vmatprep.subr.bf16.mxu0 0
        %1430 = vmatpush1.bf16.msra.mxu0 0
        %1431 = vmatprep.subr.bf16.mxu0 0
        %1432 = vmatpush1.bf16.msra.mxu0 0
        %1433 = vmatprep.subr.bf16.mxu0 0
        %1434 = vmatpush1.bf16.msra.mxu0 0
        %1435 = vmatprep.subr.bf16.mxu0 0
        %1436 = vmatpush1.bf16.msra.mxu0 0
        %1437 = vmatprep.subr.bf16.mxu0 0
        %1438 = vmatpush1.bf16.msra.mxu0 0
        %1439 = vmatprep.subr.bf16.mxu0 0
        %1440 = vmatpush1.bf16.msra.mxu0 %v1423
        %1441 = vmatprep.subr.bf16.mxu0 0
        %1442 = vmatpush2.bf16.msra.mxu0 0
        %1443 = vmatprep.subr.bf16.mxu0 0
        %1444 = vmatpush2.bf16.msra.mxu0 0
        %1445 = vmatprep.subr.bf16.mxu0 0
        %1446 = vmatpush2.bf16.msra.mxu0 0
        %1447 = vmatprep.subr.bf16.mxu0 0
        %1448 = vmatpush2.bf16.msra.mxu0 0
        %1449 = vmatprep.subr.bf16.mxu0 0
        %1450 = vmatpush2.bf16.msra.mxu0 0
        %1451 = vmatprep.subr.bf16.mxu0 0
        %1452 = vmatpush2.bf16.msra.mxu0 0
        %1453 = vmatprep.subr.bf16.mxu0 0
        %1454 = vmatpush2.bf16.msra.mxu0 0
        %1455 = vmatprep.subr.bf16.mxu0 0
        %1456 = vmatpush2.bf16.msra.mxu0 0
        %1457 = vmatprep.mubr.bf16.mxu0 0
        %1458 = vmatmul.mubr.bf16.gmra.mxu0 %v1420
        %v1459 = vpop.f32.mrf.mxu0
        %v1460 = vadd.f32 0.0, %v1459
        %v1461 = vpop.f32.mrf.mxu0
        %v1462 = vpop.f32.mrf.mxu0
        %v1463 = vpop.f32.mrf.mxu0
        %1464 = vdwg.mxu0
        %1465 = vrot.lane.b32.xlu0 %v791, 104
        %v1466 = vpop.permute.xlu0 %1465
        %1467 = vrot.lane.b32.xlu0 %v791, 72
        %v1468 = vpop.permute.xlu0 %1467
        %v1470 = vsel %vm796, %v1466, 0
        %v1473 = vsel %vm796, %v1468, 0
        %1475 = vmatprep.subr.bf16.mxu0 0
        %1476 = vmatpush1.bf16.xpose.msra.mxu0 0
        %1477 = vmatprep.subr.bf16.mxu0 0
        %1478 = vmatpush1.bf16.xpose.msra.mxu0 0
        %1479 = vmatprep.subr.bf16.mxu0 0
        %1480 = vmatpush1.bf16.xpose.msra.mxu0 0
        %1481 = vmatprep.subr.bf16.mxu0 0
        %1482 = vmatpush1.bf16.xpose.msra.mxu0 0
        %1483 = vmatprep.subr.bf16.mxu0 0
        %1484 = vmatpush1.bf16.xpose.msra.mxu0 0
        %1485 = vmatprep.subr.bf16.mxu0 0
        %1486 = vmatpush1.bf16.xpose.msra.mxu0 0
        %1487 = vmatprep.subr.bf16.mxu0 0
        %1488 = vmatpush1.bf16.xpose.msra.mxu0 0
        %1489 = vmatprep.subr.bf16.mxu0 0
        %1490 = vmatpush1.bf16.xpose.msra.mxu0 %v1473
        %1491 = vmatprep.subr.bf16.mxu0 0
        %1492 = vmatpush2.bf16.xpose.msra.mxu0 0
        %1493 = vmatprep.subr.bf16.mxu0 0
        %1494 = vmatpush2.bf16.xpose.msra.mxu0 0
        %1495 = vmatprep.subr.bf16.mxu0 0
        %1496 = vmatpush2.bf16.xpose.msra.mxu0 0
        %1497 = vmatprep.subr.bf16.mxu0 0
        %1498 = vmatpush2.bf16.xpose.msra.mxu0 0
        %1499 = vmatprep.subr.bf16.mxu0 0
        %1500 = vmatpush2.bf16.xpose.msra.mxu0 0
        %1501 = vmatprep.subr.bf16.mxu0 0
        %1502 = vmatpush2.bf16.xpose.msra.mxu0 0
        %1503 = vmatprep.subr.bf16.mxu0 0
        %1504 = vmatpush2.bf16.xpose.msra.mxu0 0
        %1505 = vmatprep.subr.bf16.mxu0 0
        %1506 = vmatpush2.bf16.xpose.msra.mxu0 0
        %1507 = vmatprep.mubr.bf16.mxu0 0
        %1508 = vmatmul.mubr.bf16.gmra.mxu0 %v1470
        %v1509 = vpop.f32.mrf.mxu0
        %v1510 = vadd.f32 0.0, %v1509
        %v1511 = vpop.f32.mrf.mxu0
        %v1512 = vpop.f32.mrf.mxu0
        %v1513 = vpop.f32.mrf.mxu0
        %1514 = vdwg.mxu0
        %1515 = vrot.lane.b32.xlu0 %v792, 104
        %v1516 = vpop.permute.xlu0 %1515
        %1517 = vrot.lane.b32.xlu0 %v792, 72
        %v1518 = vpop.permute.xlu0 %1517
        %v1520 = vsel %vm796, %v1516, 0
        %v1523 = vsel %vm796, %v1518, 0
        %1525 = vmatprep.subr.bf16.mxu0 0
        %1526 = vmatpush1.bf16.xpose.msra.mxu0 0
        %1527 = vmatprep.subr.bf16.mxu0 0
        %1528 = vmatpush1.bf16.xpose.msra.mxu0 0
        %1529 = vmatprep.subr.bf16.mxu0 0
        %1530 = vmatpush1.bf16.xpose.msra.mxu0 0
        %1531 = vmatprep.subr.bf16.mxu0 0
        %1532 = vmatpush1.bf16.xpose.msra.mxu0 0
        %1533 = vmatprep.subr.bf16.mxu0 0
        %1534 = vmatpush1.bf16.xpose.msra.mxu0 0
        %1535 = vmatprep.subr.bf16.mxu0 0
        %1536 = vmatpush1.bf16.xpose.msra.mxu0 0
        %1537 = vmatprep.subr.bf16.mxu0 0
        %1538 = vmatpush1.bf16.xpose.msra.mxu0 0
        %1539 = vmatprep.subr.bf16.mxu0 0
        %1540 = vmatpush1.bf16.xpose.msra.mxu0 %v1523
        %1541 = vmatprep.subr.bf16.mxu0 0
        %1542 = vmatpush2.bf16.xpose.msra.mxu0 0
        %1543 = vmatprep.subr.bf16.mxu0 0
        %1544 = vmatpush2.bf16.xpose.msra.mxu0 0
        %1545 = vmatprep.subr.bf16.mxu0 0
        %1546 = vmatpush2.bf16.xpose.msra.mxu0 0
        %1547 = vmatprep.subr.bf16.mxu0 0
        %1548 = vmatpush2.bf16.xpose.msra.mxu0 0
        %1549 = vmatprep.subr.bf16.mxu0 0
        %1550 = vmatpush2.bf16.xpose.msra.mxu0 0
        %1551 = vmatprep.subr.bf16.mxu0 0
        %1552 = vmatpush2.bf16.xpose.msra.mxu0 0
        %1553 = vmatprep.subr.bf16.mxu0 0
        %1554 = vmatpush2.bf16.xpose.msra.mxu0 0
        %1555 = vmatprep.subr.bf16.mxu0 0
        %1556 = vmatpush2.bf16.xpose.msra.mxu0 0
        %1557 = vmatprep.mubr.bf16.mxu0 0
        %1558 = vmatmul.mubr.bf16.gmra.mxu0 %v1520
        %v1559 = vpop.f32.mrf.mxu0
        %v1560 = vadd.f32 0.0, %v1559
        %v1561 = vpop.f32.mrf.mxu0
        %v1562 = vpop.f32.mrf.mxu0
        %v1563 = vpop.f32.mrf.mxu0
        %1564 = vdwg.mxu0
        %v1565 = vmul.f32 %v1510, 0.35355338
        %v1566 = vmul.f32 %v1560, 0.35355338
        %v1567 = vadd.f32 %v1565, %v784
        %v1568 = vadd.f32 %v1566, %v788
        %v1569 = vsel %vm796, %v1567, -inf
        %1570 = vmax.xlane.f32.xlu0 %v1569
        %v1571 = vpop.xlane.xlu0 %1570
        %v1572 = vsel %vm796, %v1568, -inf
        %1573 = vmax.xlane.f32.xlu0 %v1572
        %v1574 = vpop.xlane.xlu0 %1573
        %v1575 = vsub.f32 %v1567, %v1571
        %v1576 = vsub.f32 %v1568, %v1574
        %v1577 = vmul.f32 %v1575, 1.442695
        %v1578 = vpow.pop %v1577
        %v1579 = vmul.f32 %v1576, 1.442695
        %v1580 = vpow.pop %v1579
        %v1581 = vsel %vm796, %v1578, 0.0
        %1582 = vadd.xlane.f32.xlu0 %v1581
        %v1583 = vpop.xlane.xlu0 %1582
        %v1584 = vsel %vm796, %v1580, 0.0
        %1585 = vadd.xlane.f32.xlu0 %v1584
        %v1586 = vpop.xlane.xlu0 %1585
        %v1587 = vrcp.pop %v1583
        %v1588 = vrcp.pop %v1586
        %v1589 = vmul.f32 %v1578, %v1587
        %v1590 = vmul.f32 %v1580, %v1588
        %v1591 = vpack.c.bf16 %v1589, %v1589
        %v1592 = vpack.c.bf16 %v1590, %v1590
        %1593 = vrot.lane.b32.xlu0 %v791, 40
        %v1594 = vpop.permute.xlu0 %1593
        %v1596 = vsel %vm796, %v1591, 0
        %v1599 = vsel %vm925, %v1594, 0
        %1601 = vmatprep.subr.bf16.mxu0 0
        %1602 = vmatpush1.bf16.msra.mxu0 0
        %1603 = vmatprep.subr.bf16.mxu0 0
        %1604 = vmatpush1.bf16.msra.mxu0 0
        %1605 = vmatprep.subr.bf16.mxu0 0
        %1606 = vmatpush1.bf16.msra.mxu0 0
        %1607 = vmatprep.subr.bf16.mxu0 0
        %1608 = vmatpush1.bf16.msra.mxu0 0
        %1609 = vmatprep.subr.bf16.mxu0 0
        %1610 = vmatpush1.bf16.msra.mxu0 0
        %1611 = vmatprep.subr.bf16.mxu0 0
        %1612 = vmatpush1.bf16.msra.mxu0 0
        %1613 = vmatprep.subr.bf16.mxu0 0
        %1614 = vmatpush1.bf16.msra.mxu0 0
        %1615 = vmatprep.subr.bf16.mxu0 0
        %1616 = vmatpush1.bf16.msra.mxu0 %v1599
        %1617 = vmatprep.subr.bf16.mxu0 0
        %1618 = vmatpush2.bf16.msra.mxu0 0
        %1619 = vmatprep.subr.bf16.mxu0 0
        %1620 = vmatpush2.bf16.msra.mxu0 0
        %1621 = vmatprep.subr.bf16.mxu0 0
        %1622 = vmatpush2.bf16.msra.mxu0 0
        %1623 = vmatprep.subr.bf16.mxu0 0
        %1624 = vmatpush2.bf16.msra.mxu0 0
        %1625 = vmatprep.subr.bf16.mxu0 0
        %1626 = vmatpush2.bf16.msra.mxu0 0
        %1627 = vmatprep.subr.bf16.mxu0 0
        %1628 = vmatpush2.bf16.msra.mxu0 0
        %1629 = vmatprep.subr.bf16.mxu0 0
        %1630 = vmatpush2.bf16.msra.mxu0 0
        %1631 = vmatprep.subr.bf16.mxu0 0
        %1632 = vmatpush2.bf16.msra.mxu0 0
        %1633 = vmatprep.mubr.bf16.mxu0 0
        %1634 = vmatmul.mubr.bf16.gmra.mxu0 %v1596
        %v1635 = vpop.f32.mrf.mxu0
        %v1636 = vadd.f32 0.0, %v1635
        %v1637 = vpop.f32.mrf.mxu0
        %v1638 = vpop.f32.mrf.mxu0
        %v1639 = vpop.f32.mrf.mxu0
        %1640 = vdwg.mxu0
        %1641 = vrot.lane.b32.xlu0 %v792, 40
        %v1642 = vpop.permute.xlu0 %1641
        %v1644 = vsel %vm796, %v1592, 0
        %v1647 = vsel %vm925, %v1642, 0
        %1649 = vmatprep.subr.bf16.mxu0 0
        %1650 = vmatpush1.bf16.msra.mxu0 0
        %1651 = vmatprep.subr.bf16.mxu0 0
        %1652 = vmatpush1.bf16.msra.mxu0 0
        %1653 = vmatprep.subr.bf16.mxu0 0
        %1654 = vmatpush1.bf16.msra.mxu0 0
        %1655 = vmatprep.subr.bf16.mxu0 0
        %1656 = vmatpush1.bf16.msra.mxu0 0
        %1657 = vmatprep.subr.bf16.mxu0 0
        %1658 = vmatpush1.bf16.msra.mxu0 0
        %1659 = vmatprep.subr.bf16.mxu0 0
        %1660 = vmatpush1.bf16.msra.mxu0 0
        %1661 = vmatprep.subr.bf16.mxu0 0
        %1662 = vmatpush1.bf16.msra.mxu0 0
        %1663 = vmatprep.subr.bf16.mxu0 0
        %1664 = vmatpush1.bf16.msra.mxu0 %v1647
        %1665 = vmatprep.subr.bf16.mxu0 0
        %1666 = vmatpush2.bf16.msra.mxu0 0
        %1667 = vmatprep.subr.bf16.mxu0 0
        %1668 = vmatpush2.bf16.msra.mxu0 0
        %1669 = vmatprep.subr.bf16.mxu0 0
        %1670 = vmatpush2.bf16.msra.mxu0 0
        %1671 = vmatprep.subr.bf16.mxu0 0
        %1672 = vmatpush2.bf16.msra.mxu0 0
        %1673 = vmatprep.subr.bf16.mxu0 0
        %1674 = vmatpush2.bf16.msra.mxu0 0
        %1675 = vmatprep.subr.bf16.mxu0 0
        %1676 = vmatpush2.bf16.msra.mxu0 0
        %1677 = vmatprep.subr.bf16.mxu0 0
        %1678 = vmatpush2.bf16.msra.mxu0 0
        %1679 = vmatprep.subr.bf16.mxu0 0
        %1680 = vmatpush2.bf16.msra.mxu0 0
        %1681 = vmatprep.mubr.bf16.mxu0 0
        %1682 = vmatmul.mubr.bf16.gmra.mxu0 %v1644
        %v1683 = vpop.f32.mrf.mxu0
        %v1684 = vadd.f32 0.0, %v1683
        %v1685 = vpop.f32.mrf.mxu0
        %v1686 = vpop.f32.mrf.mxu0
        %v1687 = vpop.f32.mrf.mxu0
        %1688 = vdwg.mxu0
        %1691 = vrot.lane.b32.xlu0 %v1188, 8
        %v1692 = vpop.permute.xlu0 %1691
        %1693 = vrot.lane.b32.xlu0 %v1236, 8
        %v1694 = vpop.permute.xlu0 %1693
        %1699 = vrot.lane.b32.xlu0 %v1412, 16
        %v1700 = vpop.permute.xlu0 %1699
        %1701 = vrot.lane.b32.xlu0 %v1460, 16
        %v1702 = vpop.permute.xlu0 %1701
        %1707 = vrot.lane.b32.xlu0 %v1636, 24
        %v1708 = vpop.permute.xlu0 %1707
        %1709 = vrot.lane.b32.xlu0 %v1684, 24
        %v1710 = vpop.permute.xlu0 %1709
        %v1713 = vsel %vm796, %v964, %v1692
        %v1714 = vsel %vm796, %v1012, %v1694
        %vm1715 = vcmask 130048
        %v1716 = vsel %vm1715, %v1713, %v1700
        %v1717 = vsel %vm1715, %v1714, %v1702
        %vm1718 = vcmask 195584
        %v1719 = vsel %vm1718, %v1716, %v1708
        %v1720 = vsel %vm1718, %v1717, %v1710
        %v1721 = vpack.c.bf16 %v1720, %v1719
        %v1722 = vld [vmem:[%s659] sm:$0xf]
        %v1723 = vld [vmem:[%s659 + $0x4] sm:$0xf]
        %v1724 = vld [vmem:[%s659 + $0x8] sm:$0xf]
        %v1725 = vld [vmem:[%s659 + $0xc] sm:$0xf]
        %v1726 = vld [vmem:[%s662] sm:$0x1]
        %v1728 = vlaneseq
        %v1729 = vshrl.u32 %v1728, 7
        %v1730 = vsub.s32 0, %v1729
        %v1731 = vrot.slane %v1726, %v1730
        %v1737 = vunpack.c.l.b16 %v1722
        %v1738 = vunpack.c.l.b16 %v1723
        %v1739 = vunpack.c.l.b16 %v1724
        %v1740 = vunpack.c.l.b16 %v1725
        %v1741 = vpack.c.b16 %v1738, %v1737
        %v1742 = vpack.c.b16 %v1740, %v1739
        %v1746 = vsel %vm728, %v1721, 0
        %1748 = vmatprep.subr.bf16.mxu0 0
        %1749 = vmatpush1.bf16.msra.mxu0 0
        %1750 = vmatprep.subr.bf16.mxu0 0
        %1751 = vmatpush1.bf16.msra.mxu0 0
        %1752 = vmatprep.subr.bf16.mxu0 0
        %1753 = vmatpush1.bf16.msra.mxu0 0
        %1754 = vmatprep.subr.bf16.mxu0 0
        %1755 = vmatpush1.bf16.msra.mxu0 0
        %1756 = vmatprep.subr.bf16.mxu0 0
        %1757 = vmatpush1.bf16.msra.mxu0 0
        %1758 = vmatprep.subr.bf16.mxu0 0
        %1759 = vmatpush1.bf16.msra.mxu0 0
        %1760 = vmatprep.subr.bf16.mxu0 0
        %1761 = vmatpush1.bf16.msra.mxu0 %v1742
        %1762 = vmatprep.subr.bf16.mxu0 0
        %1763 = vmatpush1.bf16.msra.mxu0 %v1741
        %1764 = vmatprep.subr.bf16.mxu0 0
        %1765 = vmatpush2.bf16.msra.mxu0 0
        %1766 = vmatprep.subr.bf16.mxu0 0
        %1767 = vmatpush2.bf16.msra.mxu0 0
        %1768 = vmatprep.subr.bf16.mxu0 0
        %1769 = vmatpush2.bf16.msra.mxu0 0
        %1770 = vmatprep.subr.bf16.mxu0 0
        %1771 = vmatpush2.bf16.msra.mxu0 0
        %1772 = vmatprep.subr.bf16.mxu0 0
        %1773 = vmatpush2.bf16.msra.mxu0 0
        %1774 = vmatprep.subr.bf16.mxu0 0
        %1775 = vmatpush2.bf16.msra.mxu0 0
        %1776 = vmatprep.subr.bf16.mxu0 0
        %1777 = vmatpush2.bf16.msra.mxu0 0
        %1778 = vmatprep.subr.bf16.mxu0 0
        %1779 = vmatpush2.bf16.msra.mxu0 0
        %1780 = vmatprep.mubr.bf16.mxu0 0
        %1781 = vmatmul.mubr.bf16.gmra.mxu0 %v1746
        %v1782 = vpop.f32.mrf.mxu0
        %v1783 = vadd.f32 %v1731, %v1782
        %v1784 = vpop.f32.mrf.mxu0
        %v1785 = vpop.f32.mrf.mxu0
        %v1786 = vadd.f32 %v1731, %v1785
        %v1787 = vpop.f32.mrf.mxu0
        %1788 = vdwg.mxu0
        %v1789 = vadd.f32 %v702, %v1783
        %v1790 = vadd.f32 %v703, %v1786
        %v1791 = vld [vmem:[%s665] sm:$0x1]
        %v1792 = vld [vmem:[%s668] sm:$0x1]
        %v1793 = vsel %vm728, %v1789, 0.0
        %1794 = vadd.xlane.f32.xlu0 %v1793
        %v1795 = vpop.xlane.xlu0 %1794
        %v1796 = vsel %vm728, %v1790, 0.0
        %1797 = vadd.xlane.f32.xlu0 %v1796
        %v1798 = vpop.xlane.xlu0 %1797
        %v1799 = vrcp.pop 32.0
        %v1800 = vmul.f32 %v1795, %v1799
        %v1801 = vmul.f32 %v1798, %v1799
        %v1802 = vsub.f32 %v1789, %v1800
        %v1803 = vsub.f32 %v1790, %v1801
        %v1804 = vmul.f32 %v1802, %v1802
        %v1805 = vmul.f32 %v1803, %v1803
        %v1806 = vsel %vm728, %v1804, 0.0
        %1807 = vadd.xlane.f32.xlu0 %v1806
        %v1808 = vpop.xlane.xlu0 %1807
        %v1809 = vsel %vm728, %v1805, 0.0
        %1810 = vadd.xlane.f32.xlu0 %v1809
        %v1811 = vpop.xlane.xlu0 %1810
        %v1812 = vmul.f32 %v1808, %v1799
        %v1813 = vmul.f32 %v1811, %v1799
        %v1814 = vadd.f32 %v1812, 1e-05
        %v1815 = vadd.f32 %v1813, 1e-05
        %v1816 = vrsqrt.pop %v1814
        %v1817 = vrsqrt.pop %v1815
        %v1818 = vmul.f32 %v1802, %v1816
        %v1819 = vmul.f32 %v1803, %v1817
        %v1821 = vlaneseq
        %v1822 = vshrl.u32 %v1821, 7
        %v1823 = vsub.s32 0, %v1822
        %v1824 = vrot.slane %v1791, %v1823
        %v1826 = vmul.f32 %v1818, %v1824
        %v1827 = vmul.f32 %v1819, %v1824
        %v1829 = vlaneseq
        %v1830 = vshrl.u32 %v1829, 7
        %v1831 = vsub.s32 0, %v1830
        %v1832 = vrot.slane %v1792, %v1831
        %v1834 = vadd.f32 %v1826, %v1832
        %v1835 = vadd.f32 %v1827, %v1832
        %v1836 = vpack.c.bf16 %v1835, %v1834
        %v1837 = vld [vmem:[%s673] sm:$0xf]
        %v1838 = vld [vmem:[%s673 + $0x4] sm:$0xf]
        %v1839 = vld [vmem:[%s673 + $0x8] sm:$0xf]
        %v1840 = vld [vmem:[%s673 + $0xc] sm:$0xf]
        %v1841 = vld [vmem:[%s676] sm:$0x1]
        %v1843 = vlaneseq
        %v1844 = vshrl.u32 %v1843, 7
        %v1845 = vsub.s32 0, %v1844
        %v1846 = vrot.slane %v1841, %v1845
        %v1852 = vunpack.c.l.b16 %v1837
        %v1853 = vunpack.c.l.b16 %v1838
        %v1854 = vunpack.c.l.b16 %v1839
        %v1855 = vunpack.c.l.b16 %v1840
        %v1856 = vpack.c.b16 %v1853, %v1852
        %v1857 = vpack.c.b16 %v1855, %v1854
        %v1861 = vsel %vm728, %v1836, 0
        %1863 = vmatprep.subr.bf16.mxu0 0
        %1864 = vmatpush1.bf16.msra.mxu0 0
        %1865 = vmatprep.subr.bf16.mxu0 0
        %1866 = vmatpush1.bf16.msra.mxu0 0
        %1867 = vmatprep.subr.bf16.mxu0 0
        %1868 = vmatpush1.bf16.msra.mxu0 0
        %1869 = vmatprep.subr.bf16.mxu0 0
        %1870 = vmatpush1.bf16.msra.mxu0 0
        %1871 = vmatprep.subr.bf16.mxu0 0
        %1872 = vmatpush1.bf16.msra.mxu0 0
        %1873 = vmatprep.subr.bf16.mxu0 0
        %1874 = vmatpush1.bf16.msra.mxu0 0
        %1875 = vmatprep.subr.bf16.mxu0 0
        %1876 = vmatpush1.bf16.msra.mxu0 %v1857
        %1877 = vmatprep.subr.bf16.mxu0 0
        %1878 = vmatpush1.bf16.msra.mxu0 %v1856
        %1879 = vmatprep.subr.bf16.mxu0 0
        %1880 = vmatpush2.bf16.msra.mxu0 0
        %1881 = vmatprep.subr.bf16.mxu0 0
        %1882 = vmatpush2.bf16.msra.mxu0 0
        %1883 = vmatprep.subr.bf16.mxu0 0
        %1884 = vmatpush2.bf16.msra.mxu0 0
        %1885 = vmatprep.subr.bf16.mxu0 0
        %1886 = vmatpush2.bf16.msra.mxu0 0
        %1887 = vmatprep.subr.bf16.mxu0 0
        %1888 = vmatpush2.bf16.msra.mxu0 0
        %1889 = vmatprep.subr.bf16.mxu0 0
        %1890 = vmatpush2.bf16.msra.mxu0 0
        %1891 = vmatprep.subr.bf16.mxu0 0
        %1892 = vmatpush2.bf16.msra.mxu0 0
        %1893 = vmatprep.subr.bf16.mxu0 0
        %1894 = vmatpush2.bf16.msra.mxu0 0
        %1895 = vmatprep.mubr.bf16.mxu0 0
        %1896 = vmatmul.mubr.bf16.gmra.mxu0 %v1861
        %v1897 = vpop.f32.mrf.mxu0
        %v1898 = vadd.f32 %v1846, %v1897
        %v1899 = vpop.f32.mrf.mxu0
        %v1900 = vpop.f32.mrf.mxu0
        %v1901 = vadd.f32 %v1846, %v1900
        %v1902 = vpop.f32.mrf.mxu0
        %1903 = vdwg.mxu0
        %v1904 = vmax.f32 %v1898, 0.0
        %v1905 = vmax.f32 %v1901, 0.0
        %v1906 = vpack.c.bf16 %v1905, %v1904
        %v1907 = vld [vmem:[%s681] sm:$0xf]
        %v1908 = vld [vmem:[%s681 + $0x4] sm:$0xf]
        %v1909 = vld [vmem:[%s681 + $0x8] sm:$0xf]
        %v1910 = vld [vmem:[%s681 + $0xc] sm:$0xf]
        %v1911 = vld [vmem:[%s681 + $0x10] sm:$0xf]
        %v1912 = vld [vmem:[%s681 + $0x14] sm:$0xf]
        %v1913 = vld [vmem:[%s681 + $0x18] sm:$0xf]
        %v1914 = vld [vmem:[%s681 + $0x1c] sm:$0xf]
        %v1915 = vld [vmem:[%s684] sm:$0x1]
        %v1917 = vlaneseq
        %v1918 = vshrl.u32 %v1917, 7
        %v1919 = vsub.s32 0, %v1918
        %v1920 = vrot.slane %v1915, %v1919
        %v1930 = vunpack.c.l.b16 %v1907
        %v1931 = vunpack.c.l.b16 %v1908
        %v1932 = vunpack.c.l.b16 %v1909
        %v1933 = vunpack.c.l.b16 %v1910
        %v1934 = vunpack.c.l.b16 %v1911
        %v1935 = vunpack.c.l.b16 %v1912
        %v1936 = vunpack.c.l.b16 %v1913
        %v1937 = vunpack.c.l.b16 %v1914
        %v1938 = vpack.c.b16 %v1931, %v1930
        %v1939 = vpack.c.b16 %v1933, %v1932
        %v1940 = vpack.c.b16 %v1935, %v1934
        %v1941 = vpack.c.b16 %v1937, %v1936
        %vm1946 = vcmask 523264
        %v1948 = vsel %vm1946, %v1906, 0
        %1950 = vmatprep.subr.bf16.mxu0 0
        %1951 = vmatpush1.bf16.msra.mxu0 0
        %1952 = vmatprep.subr.bf16.mxu0 0
        %1953 = vmatpush1.bf16.msra.mxu0 0
        %1954 = vmatprep.subr.bf16.mxu0 0
        %1955 = vmatpush1.bf16.msra.mxu0 0
        %1956 = vmatprep.subr.bf16.mxu0 0
        %1957 = vmatpush1.bf16.msra.mxu0 0
        %1958 = vmatprep.subr.bf16.mxu0 0
        %1959 = vmatpush1.bf16.msra.mxu0 %v1941
        %1960 = vmatprep.subr.bf16.mxu0 0
        %1961 = vmatpush1.bf16.msra.mxu0 %v1940
        %1962 = vmatprep.subr.bf16.mxu0 0
        %1963 = vmatpush1.bf16.msra.mxu0 %v1939
        %1964 = vmatprep.subr.bf16.mxu0 0
        %1965 = vmatpush1.bf16.msra.mxu0 %v1938
        %1966 = vmatprep.subr.bf16.mxu0 0
        %1967 = vmatpush2.bf16.msra.mxu0 0
        %1968 = vmatprep.subr.bf16.mxu0 0
        %1969 = vmatpush2.bf16.msra.mxu0 0
        %1970 = vmatprep.subr.bf16.mxu0 0
        %1971 = vmatpush2.bf16.msra.mxu0 0
        %1972 = vmatprep.subr.bf16.mxu0 0
        %1973 = vmatpush2.bf16.msra.mxu0 0
        %1974 = vmatprep.subr.bf16.mxu0 0
        %1975 = vmatpush2.bf16.msra.mxu0 0
        %1976 = vmatprep.subr.bf16.mxu0 0
        %1977 = vmatpush2.bf16.msra.mxu0 0
        %1978 = vmatprep.subr.bf16.mxu0 0
        %1979 = vmatpush2.bf16.msra.mxu0 0
        %1980 = vmatprep.subr.bf16.mxu0 0
        %1981 = vmatpush2.bf16.msra.mxu0 0
        %1982 = vmatprep.mubr.bf16.mxu0 0
        %1983 = vmatmul.mubr.bf16.gmra.mxu0 %v1948
        %v1984 = vpop.f32.mrf.mxu0
        %v1985 = vadd.f32 %v1920, %v1984
        %v1986 = vpop.f32.mrf.mxu0
        %v1987 = vpop.f32.mrf.mxu0
        %v1988 = vadd.f32 %v1920, %v1987
        %v1989 = vpop.f32.mrf.mxu0
        %1990 = vdwg.mxu0
        %v1991 = vadd.f32 %v1834, %v1985
        %v1992 = vadd.f32 %v1835, %v1988
        %v1993 = vld [vmem:[%s687] sm:$0x1]
        %v1994 = vld [vmem:[%s690] sm:$0x1]
        %v1995 = vsel %vm728, %v1991, 0.0
        %1996 = vadd.xlane.f32.xlu0 %v1995
        %v1997 = vpop.xlane.xlu0 %1996
        %v1998 = vsel %vm728, %v1992, 0.0
        %1999 = vadd.xlane.f32.xlu0 %v1998
        %v2000 = vpop.xlane.xlu0 %1999
        %v2001 = vmul.f32 %v1997, %v1799
        %v2002 = vmul.f32 %v2000, %v1799
        %v2003 = vsub.f32 %v1991, %v2001
        %v2004 = vsub.f32 %v1992, %v2002
        %v2005 = vmul.f32 %v2003, %v2003
        %v2006 = vmul.f32 %v2004, %v2004
        %v2007 = vsel %vm728, %v2005, 0.0
        %2008 = vadd.xlane.f32.xlu0 %v2007
        %v2009 = vpop.xlane.xlu0 %2008
        %v2010 = vsel %vm728, %v2006, 0.0
        %2011 = vadd.xlane.f32.xlu0 %v2010
        %v2012 = vpop.xlane.xlu0 %2011
        %v2013 = vmul.f32 %v2009, %v1799
        %v2014 = vmul.f32 %v2012, %v1799
        %v2015 = vadd.f32 %v2013, 1e-05
        %v2016 = vadd.f32 %v2014, 1e-05
        %v2017 = vrsqrt.pop %v2015
        %v2018 = vrsqrt.pop %v2016
        %v2019 = vmul.f32 %v2003, %v2017
        %v2020 = vmul.f32 %v2004, %v2018
        %v2022 = vlaneseq
        %v2023 = vshrl.u32 %v2022, 7
        %v2024 = vsub.s32 0, %v2023
        %v2025 = vrot.slane %v1993, %v2024
        %v2027 = vmul.f32 %v2019, %v2025
        %v2028 = vmul.f32 %v2020, %v2025
        %v2030 = vlaneseq
        %v2031 = vshrl.u32 %v2030, 7
        %v2032 = vsub.s32 0, %v2031
        %v2033 = vrot.slane %v1994, %v2032
        %v2035 = vadd.f32 %v2027, %v2033
        %v2036 = vadd.f32 %v2028, %v2033
        %2037 = vst.msk [vmem:[#allocation7] sm:$0xff] %vm728, %v2035
        %2038 = vst.msk [vmem:[#allocation7 + $0x8] sm:$0xff] %vm728, %v2036
        // Predicated region
        $region89: #{tpu_custom_call.1} parent=75 // pred_check
          %p2039 = pneg %p422
        $region90: #{tpu_custom_call.1} parent=75 // pred_check_branch
          %2041 = sbr.rel (%p2039) target = $region92
        $region91: #{tpu_custom_call.1} parent=75 // pred_region
          %s2042 = smul.u32 2, %s32
          %s2044 = ssub.s32 256, 256
          %2045 = vsyncadd [#allocation4], %s2044
          %s2046 = smul.addr %s2042, 128
          %s2047 = scalar_lea.hbm %s14, %s2046
          %s2048 = sshll.u32 [#allocation7], 4
          %s2049 = int_to_ptr.vmem [resolvable:$true] %s2048
          %2054 = dma.vmem_to_hbm [thread:$0]  %s2049, 256, %s2047, [#allocation4], 128, 128, 8
        $region92: #{tpu_custom_call.1} parent=75 // pred_fallthru
          _
        // Predicated region
        $region93: #{tpu_custom_call.1} parent=75 // pred_check
          %p2055 = pneg %p422
        $region94: #{tpu_custom_call.1} parent=75 // pred_check_branch
          %2057 = sbr.rel (%p2055) target = $region96
        $region95: #{tpu_custom_call.1} parent=75 // pred_region
          %2058 = dma.done [#allocation4], 256
        $region96: #{tpu_custom_call.1} parent=75 // pred_fallthru
          _
      $region76: #{tpu_custom_call.1} parent=5 // pred_fallthru
        _
      %p2059 = scmp.le.s32.totalorder 2, %s23
      // Predicated region
      $region97: #{tpu_custom_call.1} parent=5 // pred_check
        %p2060 = pneg %p2059
      $region98: #{tpu_custom_call.1} parent=5 // pred_check_branch
        %2062 = sbr.rel (%p2060) target = $region100
      $region99: #{tpu_custom_call.1} parent=5 // pred_region
        %s2063 = ssub.s32 %s23, 2
      $region100: #{tpu_custom_call.1} parent=5 // pred_fallthru
        _
    $region6: #{tpu_custom_call.1} parent=1 // loop_footer
      %s27 = sadd.s32 1, %s23
    $region7: #{tpu_custom_call.1} parent=1 // loop_footer_branch
      %22 = sbr.rel target = $region3
    $region8: #{tpu_custom_call.1} parent=1 // loop_exit
      _
    %2064 = vsyncpa [#allocation3], 1
    %s2065 = scalar_lea.sflag [#allocation3], 1
    %2066 = vsyncpa %s2065, 1
    %2067 = vsyncpa [#allocation6], 1
    %2068 = vsyncpa [#allocation4], 1
    %s2069 = scalar_lea.sflag [#allocation4], 1
    %2070 = vsyncpa %s2069, 1

</llo_original>
